<compile_context>
chip_gen: v7x
topology: tpu7x:2x2x1
jax: 0.10.0
libtpu: 0.0.40
codegen_flags: <defaults>
</compile_context>

<pallas_src>
import functools

import jax
import jax.numpy as jnp
from jax.experimental import pallas as pl
from jax.experimental.pallas import tpu as pltpu


def _round_up(n, m):
    return ((n + m - 1) // m) * m


def _extract_patches_t(x, k, stride):
    """im2col, transposed: [B, C, H, W] -> [B, C*k*k, Ho*Wo].

    Feature index is c*k*k + kh*k + kw (channel-major), matching torch's
    Conv2d weight.reshape(Cout, -1); column index is ho*Wo + wo.  Runs under
    jax.jit, so XLA fuses the slices / stack / reshape into the kernel's
    input preparation.
    """
    B, C, H, W = x.shape
    Ho = (H - k) // stride + 1
    Wo = (W - k) // stride + 1
    taps = [x[:, :, kh:kh + stride * Ho:stride, kw:kw + stride * Wo:stride]
            for kh in range(k) for kw in range(k)]       # k*k x [B, C, Ho, Wo]
    p = jnp.stack(taps, axis=2)                           # [B, C, k*k, Ho, Wo]
    return p.reshape(B, C * k * k, Ho * Wo), Ho, Wo


# ----------------------------------------------------------------------------
# Fused kernel: one batch element per grid step.
#   conv (matmul, transposed) + bias + ReLU
#   -> Flatten (torch (Cout, Ho, Wo) C-order, realized as per-channel matmuls)
#   -> Linear + ReLU stack (all output dims zero-padded to 128 lanes)
# ----------------------------------------------------------------------------
def _fused_cnn_kernel(pt_ref, wc_ref, bc_ref, w1_ref, b1_ref, *rest, c_out):
    out_ref = rest[-1]
    fc_refs = rest[:-1]                       # (w2, b2, w3, b3, ...)

    pt = pt_ref[0]                            # [K, P] bf16 patches (transposed)

    # Conv as a matmul, computed transposed: z[c, p] == conv_out[b, c, ho, wo].
    # (1/255 is already folded into wc; bias/ReLU in f32.)
    z = jnp.dot(wc_ref[...], pt, preferred_element_type=jnp.float32)  # [Cout,P]
    z = jnp.maximum(z + bc_ref[...], 0.0).astype(jnp.bfloat16)

    # Flatten + first Linear with NO reshape:
    #   fc1 = b1 + sum_c  z[c, :] @ W1[:, c*P:(c+1)*P].T
    acc = b1_ref[...]                         # [1, H1p] f32
    for c in range(c_out):                    # static unroll (c_out = hidden//2)
        acc = acc + jnp.dot(z[c:c + 1, :], w1_ref[c],
                            preferred_element_type=jnp.float32)
    y = jnp.maximum(acc, 0.0)                 # [1, H1p]

    # Remaining Linear + ReLU layers (weights pre-transposed, zero-padded).
    for i in range(0, len(fc_refs), 2):
        w_ref, b_ref = fc_refs[i], fc_refs[i + 1]
        y = jnp.dot(y.astype(jnp.bfloat16), w_ref[...],
                    preferred_element_type=jnp.float32) + b_ref[...]
        y = jnp.maximum(y, 0.0)

    out_ref[0] = y                            # [1, Hlast_pad] f32, lane-dense


def _forward_impl(params, x, *, k, stride, h_last):
    wc, bc, w1, b1, fcs = params
    B = x.shape[0]
    c_out, K = wc.shape
    _, P, h1p = w1.shape

    pt, _, _ = _extract_patches_t(x.astype(jnp.float32), k, stride)
    assert pt.shape == (B, K, P), (pt.shape, (B, K, P))
    pt = pt.astype(jnp.bfloat16)              # halve the patch DMA into VMEM

    h_out_pad = fcs[-1][1].shape[-1] if fcs else b1.shape[-1]

    in_specs = [
        pl.BlockSpec((1, K, P), lambda b: (b, 0, 0)),        # patches, per batch
        pl.BlockSpec((c_out, K), lambda b: (0, 0)),           # conv weight
        pl.BlockSpec((c_out, 1), lambda b: (0, 0)),           # conv bias (column)
        pl.BlockSpec((c_out, P, h1p), lambda b: (0, 0, 0)),   # fc1 weight, 3-D
        pl.BlockSpec((1, h1p), lambda b: (0, 0)),             # fc1 bias
    ]
    args = [pt, wc, bc, w1, b1]
    for (w, bvec) in fcs:
        in_specs.append(pl.BlockSpec(w.shape, lambda b: (0, 0)))
        in_specs.append(pl.BlockSpec(bvec.shape, lambda b: (0, 0)))
        args.extend([w, bvec])

    out = pl.pallas_call(
        functools.partial(_fused_cnn_kernel, c_out=c_out),
        out_shape=jax.ShapeDtypeStruct((B, 1, h_out_pad), jnp.float32),
        grid=(B,),
        in_specs=in_specs,
        out_specs=pl.BlockSpec((1, 1, h_out_pad), lambda b: (b, 0, 0)),
        compiler_params=pltpu.CompilerParams(
            dimension_semantics=("parallel",)),
    )(*args)
    return out[:, 0, :h_last]


# ----------------------------------------------------------------------------
# CNNLayer parameters (pre-packed at init) + forward
# ----------------------------------------------------------------------------
class CNNLayerPallas:
    """Pallas equivalent of harl CNNLayer: x/255 -> Conv2d -> ReLU -> Flatten
    -> (Linear -> ReLU) * len(hidden_sizes)."""

    def __init__(self, obs_shape, hidden_sizes, kernel_size=3, stride=1,
                 key=jax.random.PRNGKey(42)):
        # obs_shape = (channels, width, height), as in the torch module.
        c_in, in_w, in_h = obs_shape
        self.k = int(kernel_size)
        self.stride = int(stride)
        c_out = hidden_sizes[0] // 2
        # x is NCHW, so H <- in_h, W <- in_w.  For stride=1 this matches the
        # torch Linear sizing formula (in_* - k + stride); for stride > 1 the
        # torch module itself would mis-size its first Linear, so the true conv
        # output size is used here.
        Ho = (in_h - self.k) // self.stride + 1
        Wo = (in_w - self.k) // self.stride + 1
        P = Ho * Wo
        K = c_in * self.k * self.k
        conv_flat = c_out * P

        # TODO(synk): orthogonal init + nn.init.calculate_gain are host-side
        # init details; deterministic scaled-normal weights (zero bias, as in
        # init_'s constant_(x, 0)) stand in for a real checkpoint.
        k0, *ks = jax.random.split(key, 1 + len(hidden_sizes))
        conv_w = 0.05 * jax.random.normal(
            k0, (c_out, c_in, self.k, self.k), jnp.float32)
        conv_b = jnp.zeros((c_out,), jnp.float32)
        fc_w, fc_b = [], []
        sizes = [conv_flat] + list(hidden_sizes)
        for i in range(len(hidden_sizes)):
            fc_w.append(0.05 * jax.random.normal(
                ks[i], (sizes[i + 1], sizes[i]), jnp.float32))   # [out, in]
            fc_b.append(jnp.zeros((sizes[i + 1],), jnp.float32))
        self._raw = (conv_w, conv_b, fc_w, fc_b)   # kept only for testing

        # ---- pre-pack everything for the fused kernel (once, at init) -------
        # conv: fold the 1/255 input scale into the weight; bf16 MXU operand.
        wc = (conv_w.reshape(c_out, K) * (1.0 / 255.0)).astype(jnp.bfloat16)
        bc = conv_b.reshape(c_out, 1).astype(jnp.float32)
        # fc1: [H1, Cout*P] -> [Cout, P, H1], zero-pad output lanes to 128.
        h1 = hidden_sizes[0]
        h1p = _round_up(h1, 128)
        w1 = fc_w[0].T.reshape(c_out, P, h1)
        w1 = jnp.pad(w1, ((0, 0), (0, 0), (0, h1p - h1))).astype(jnp.bfloat16)
        b1 = jnp.pad(fc_b[0], (0, h1p - h1)).reshape(1, h1p).astype(jnp.float32)
        # remaining Linear layers: pre-transpose to [in, out] and zero-pad both
        # dims to the padded lane widths (unmasked, lane-dense matmuls/stores).
        fcs = []
        prev, prev_p = h1, h1p
        for i in range(1, len(hidden_sizes)):
            hi = hidden_sizes[i]
            hip = _round_up(hi, 128)
            wi = jnp.pad(fc_w[i].T, ((0, prev_p - prev), (0, hip - hi)))
            bi = jnp.pad(fc_b[i], (0, hip - hi)).reshape(1, hip)
            fcs.append((wi.astype(jnp.bfloat16), bi.astype(jnp.float32)))
            prev, prev_p = hi, hip

        self.params = (wc, bc, w1, b1, tuple(fcs))
        self._forward = jax.jit(functools.partial(
            _forward_impl, k=self.k, stride=self.stride,
            h_last=int(hidden_sizes[-1])))

    def __call__(self, x):
        # x: [B, C, H, W] (NCHW), values in [0, 255].
        return self._forward(self.params, x)


# ----------------------------------------------------------------------------
# Pure-JAX reference (f32, original weights) for a numerical sanity check.
# ----------------------------------------------------------------------------
def _reference_forward(layer, x):
    conv_w, conv_b, fc_w, fc_b = layer._raw
    xs = x.astype(jnp.float32) / 255.0
    pt, _, _ = _extract_patches_t(xs, layer.k, layer.stride)   # [B, K, P]
    z = jnp.einsum("ok,bkp->bop", conv_w.reshape(conv_w.shape[0], -1), pt)
    z = jnp.maximum(z + conv_b[None, :, None], 0.0)
    y = z.reshape(z.shape[0], -1)              # torch Flatten (Cout, Ho, Wo)
    for w, b in zip(fc_w, fc_b):
        y = jnp.maximum(y @ w.T + b, 0.0)
    return y


if __name__ == "__main__":
    key = jax.random.PRNGKey(0)
    B, C, H, W = 2, 4, 16, 16
    hidden_sizes = [32, 32]

    x = jax.random.uniform(key, (B, C, H, W), jnp.float32,
                           minval=0.0, maxval=255.0)

    layer = CNNLayerPallas(obs_shape=(C, W, H), hidden_sizes=hidden_sizes,
                           kernel_size=3, stride=1)
    out = layer(x)
    out = jax.block_until_ready(out)

    assert out.shape == (B, hidden_sizes[-1]), out.shape
    assert out.dtype == jnp.float32
    assert bool(jnp.all(jnp.isfinite(out)))

    ref = jax.block_until_ready(_reference_forward(layer, x))
    err = float(jnp.max(jnp.abs(out - ref)))
    assert err < 5e-2, f"mismatch vs f32 reference: max abs err = {err}"

    print("KERNEL_OK")
</pallas_src>

<mosaic_0001>
module attributes {stable_mosaic.version = 11 : i64} {
  func.func @_fused_cnn_kernel(%arg0: i32, %arg1: memref<1x36x196xbf16, #tpu.memory_space<vmem>>, %arg2: memref<16x36xbf16, #tpu.memory_space<vmem>>, %arg3: memref<16x1xf32, #tpu.memory_space<vmem>>, %arg4: memref<16x196x128xbf16, #tpu.memory_space<vmem>>, %arg5: memref<1x128xf32, #tpu.memory_space<vmem>>, %arg6: memref<128x128xbf16, #tpu.memory_space<vmem>>, %arg7: memref<1x128xf32, #tpu.memory_space<vmem>>, %arg8: memref<1x1x128xf32, #tpu.memory_space<vmem>>) attributes {dimension_semantics = [#tpu.dimension_semantics<parallel>], iteration_bounds = array<i64: 2>, scalar_prefetch = 0 : i64, scratch_operands = 0 : i64, tpu.core_type = #tpu.core_type<tc>, window_params = [{transform_indices = @transform_0, window_bounds = array<i64: 1, 36, 196>}, {pipeline_mode = #tpu.pipeline_mode<synchronous>, transform_indices = @transform_1, window_bounds = array<i64: 16, 36>}, {pipeline_mode = #tpu.pipeline_mode<synchronous>, transform_indices = @transform_2, window_bounds = array<i64: 16, 1>}, {pipeline_mode = #tpu.pipeline_mode<synchronous>, transform_indices = @transform_3, window_bounds = array<i64: 16, 196, 128>}, {pipeline_mode = #tpu.pipeline_mode<synchronous>, transform_indices = @transform_4, window_bounds = array<i64: 1, 128>}, {pipeline_mode = #tpu.pipeline_mode<synchronous>, transform_indices = @transform_5, window_bounds = array<i64: 128, 128>}, {pipeline_mode = #tpu.pipeline_mode<synchronous>, transform_indices = @transform_6, window_bounds = array<i64: 1, 128>}, {transform_indices = @transform_7, window_bounds = array<i64: 1, 1, 128>}]} {
    %c0 = arith.constant 0 : index
    %c0_0 = arith.constant 0 : index
    %c0_1 = arith.constant 0 : index
    %0 = vector.load %arg1[%c0, %c0_0, %c0_1] : memref<1x36x196xbf16, #tpu.memory_space<vmem>>, vector<1x36x196xbf16>
    %1 = vector.shape_cast %0 : vector<1x36x196xbf16> to vector<36x196xbf16>
    %c0_2 = arith.constant 0 : index
    %c0_3 = arith.constant 0 : index
    %2 = vector.load %arg2[%c0_2, %c0_3] : memref<16x36xbf16, #tpu.memory_space<vmem>>, vector<16x36xbf16>
    %cst = arith.constant dense<0.000000e+00> : vector<16x196xf32>
    %3 = tpu.matmul %2, %1, %cst {dimension_numbers = #tpu.dot_dimension_numbers<[1], [0], [0], [1], [0, 0, 1, 1], [], []>} : vector<16x36xbf16>, vector<36x196xbf16>, vector<16x196xf32> -> vector<16x196xf32>
    %c0_4 = arith.constant 0 : index
    %c0_5 = arith.constant 0 : index
    %4 = vector.load %arg3[%c0_4, %c0_5] : memref<16x1xf32, #tpu.memory_space<vmem>>, vector<16x1xf32>
    %5 = vector.broadcast %4 : vector<16x1xf32> to vector<16x196xf32>
    %6 = arith.addf %3, %5 : vector<16x196xf32>
    %cst_6 = arith.constant 0.000000e+00 : f32
    %7 = vector.broadcast %cst_6 : f32 to vector<16x196xf32>
    %8 = arith.maximumf %6, %7 : vector<16x196xf32>
    %9 = arith.truncf %8 : vector<16x196xf32> to vector<16x196xbf16>
    %c0_7 = arith.constant 0 : index
    %c0_8 = arith.constant 0 : index
    %10 = vector.load %arg5[%c0_7, %c0_8] : memref<1x128xf32, #tpu.memory_space<vmem>>, vector<1x128xf32>
    %11 = vector.extract_strided_slice %9 {offsets = [0, 0], sizes = [1, 196], strides = [1, 1]} : vector<16x196xbf16> to vector<1x196xbf16>
    %c0_9 = arith.constant 0 : index
    %c0_10 = arith.constant 0 : index
    %c0_11 = arith.constant 0 : index
    %12 = vector.load %arg4[%c0_9, %c0_10, %c0_11] : memref<16x196x128xbf16, #tpu.memory_space<vmem>>, vector<1x196x128xbf16>
    %13 = vector.shape_cast %12 : vector<1x196x128xbf16> to vector<196x128xbf16>
    %cst_12 = arith.constant dense<0.000000e+00> : vector<1x128xf32>
    %14 = tpu.matmul %11, %13, %cst_12 {dimension_numbers = #tpu.dot_dimension_numbers<[1], [0], [0], [1], [0, 0, 1, 1], [], []>} : vector<1x196xbf16>, vector<196x128xbf16>, vector<1x128xf32> -> vector<1x128xf32>
    %15 = arith.addf %10, %14 : vector<1x128xf32>
    %16 = vector.extract_strided_slice %9 {offsets = [1, 0], sizes = [1, 196], strides = [1, 1]} : vector<16x196xbf16> to vector<1x196xbf16>
    %c1 = arith.constant 1 : index
    %c0_13 = arith.constant 0 : index
    %c0_14 = arith.constant 0 : index
    %17 = vector.load %arg4[%c1, %c0_13, %c0_14] : memref<16x196x128xbf16, #tpu.memory_space<vmem>>, vector<1x196x128xbf16>
    %18 = vector.shape_cast %17 : vector<1x196x128xbf16> to vector<196x128xbf16>
    %cst_15 = arith.constant dense<0.000000e+00> : vector<1x128xf32>
    %19 = tpu.matmul %16, %18, %cst_15 {dimension_numbers = #tpu.dot_dimension_numbers<[1], [0], [0], [1], [0, 0, 1, 1], [], []>} : vector<1x196xbf16>, vector<196x128xbf16>, vector<1x128xf32> -> vector<1x128xf32>
    %20 = arith.addf %15, %19 : vector<1x128xf32>
    %21 = vector.extract_strided_slice %9 {offsets = [2, 0], sizes = [1, 196], strides = [1, 1]} : vector<16x196xbf16> to vector<1x196xbf16>
    %c2 = arith.constant 2 : index
    %c0_16 = arith.constant 0 : index
    %c0_17 = arith.constant 0 : index
    %22 = vector.load %arg4[%c2, %c0_16, %c0_17] : memref<16x196x128xbf16, #tpu.memory_space<vmem>>, vector<1x196x128xbf16>
    %23 = vector.shape_cast %22 : vector<1x196x128xbf16> to vector<196x128xbf16>
    %cst_18 = arith.constant dense<0.000000e+00> : vector<1x128xf32>
    %24 = tpu.matmul %21, %23, %cst_18 {dimension_numbers = #tpu.dot_dimension_numbers<[1], [0], [0], [1], [0, 0, 1, 1], [], []>} : vector<1x196xbf16>, vector<196x128xbf16>, vector<1x128xf32> -> vector<1x128xf32>
    %25 = arith.addf %20, %24 : vector<1x128xf32>
    %26 = vector.extract_strided_slice %9 {offsets = [3, 0], sizes = [1, 196], strides = [1, 1]} : vector<16x196xbf16> to vector<1x196xbf16>
    %c3 = arith.constant 3 : index
    %c0_19 = arith.constant 0 : index
    %c0_20 = arith.constant 0 : index
    %27 = vector.load %arg4[%c3, %c0_19, %c0_20] : memref<16x196x128xbf16, #tpu.memory_space<vmem>>, vector<1x196x128xbf16>
    %28 = vector.shape_cast %27 : vector<1x196x128xbf16> to vector<196x128xbf16>
    %cst_21 = arith.constant dense<0.000000e+00> : vector<1x128xf32>
    %29 = tpu.matmul %26, %28, %cst_21 {dimension_numbers = #tpu.dot_dimension_numbers<[1], [0], [0], [1], [0, 0, 1, 1], [], []>} : vector<1x196xbf16>, vector<196x128xbf16>, vector<1x128xf32> -> vector<1x128xf32>
    %30 = arith.addf %25, %29 : vector<1x128xf32>
    %31 = vector.extract_strided_slice %9 {offsets = [4, 0], sizes = [1, 196], strides = [1, 1]} : vector<16x196xbf16> to vector<1x196xbf16>
    %c4 = arith.constant 4 : index
    %c0_22 = arith.constant 0 : index
    %c0_23 = arith.constant 0 : index
    %32 = vector.load %arg4[%c4, %c0_22, %c0_23] : memref<16x196x128xbf16, #tpu.memory_space<vmem>>, vector<1x196x128xbf16>
    %33 = vector.shape_cast %32 : vector<1x196x128xbf16> to vector<196x128xbf16>
    %cst_24 = arith.constant dense<0.000000e+00> : vector<1x128xf32>
    %34 = tpu.matmul %31, %33, %cst_24 {dimension_numbers = #tpu.dot_dimension_numbers<[1], [0], [0], [1], [0, 0, 1, 1], [], []>} : vector<1x196xbf16>, vector<196x128xbf16>, vector<1x128xf32> -> vector<1x128xf32>
    %35 = arith.addf %30, %34 : vector<1x128xf32>
    %36 = vector.extract_strided_slice %9 {offsets = [5, 0], sizes = [1, 196], strides = [1, 1]} : vector<16x196xbf16> to vector<1x196xbf16>
    %c5 = arith.constant 5 : index
    %c0_25 = arith.constant 0 : index
    %c0_26 = arith.constant 0 : index
    %37 = vector.load %arg4[%c5, %c0_25, %c0_26] : memref<16x196x128xbf16, #tpu.memory_space<vmem>>, vector<1x196x128xbf16>
    %38 = vector.shape_cast %37 : vector<1x196x128xbf16> to vector<196x128xbf16>
    %cst_27 = arith.constant dense<0.000000e+00> : vector<1x128xf32>
    %39 = tpu.matmul %36, %38, %cst_27 {dimension_numbers = #tpu.dot_dimension_numbers<[1], [0], [0], [1], [0, 0, 1, 1], [], []>} : vector<1x196xbf16>, vector<196x128xbf16>, vector<1x128xf32> -> vector<1x128xf32>
    %40 = arith.addf %35, %39 : vector<1x128xf32>
    %41 = vector.extract_strided_slice %9 {offsets = [6, 0], sizes = [1, 196], strides = [1, 1]} : vector<16x196xbf16> to vector<1x196xbf16>
    %c6 = arith.constant 6 : index
    %c0_28 = arith.constant 0 : index
    %c0_29 = arith.constant 0 : index
    %42 = vector.load %arg4[%c6, %c0_28, %c0_29] : memref<16x196x128xbf16, #tpu.memory_space<vmem>>, vector<1x196x128xbf16>
    %43 = vector.shape_cast %42 : vector<1x196x128xbf16> to vector<196x128xbf16>
    %cst_30 = arith.constant dense<0.000000e+00> : vector<1x128xf32>
    %44 = tpu.matmul %41, %43, %cst_30 {dimension_numbers = #tpu.dot_dimension_numbers<[1], [0], [0], [1], [0, 0, 1, 1], [], []>} : vector<1x196xbf16>, vector<196x128xbf16>, vector<1x128xf32> -> vector<1x128xf32>
    %45 = arith.addf %40, %44 : vector<1x128xf32>
    %46 = vector.extract_strided_slice %9 {offsets = [7, 0], sizes = [1, 196], strides = [1, 1]} : vector<16x196xbf16> to vector<1x196xbf16>
    %c7 = arith.constant 7 : index
    %c0_31 = arith.constant 0 : index
    %c0_32 = arith.constant 0 : index
    %47 = vector.load %arg4[%c7, %c0_31, %c0_32] : memref<16x196x128xbf16, #tpu.memory_space<vmem>>, vector<1x196x128xbf16>
    %48 = vector.shape_cast %47 : vector<1x196x128xbf16> to vector<196x128xbf16>
    %cst_33 = arith.constant dense<0.000000e+00> : vector<1x128xf32>
    %49 = tpu.matmul %46, %48, %cst_33 {dimension_numbers = #tpu.dot_dimension_numbers<[1], [0], [0], [1], [0, 0, 1, 1], [], []>} : vector<1x196xbf16>, vector<196x128xbf16>, vector<1x128xf32> -> vector<1x128xf32>
    %50 = arith.addf %45, %49 : vector<1x128xf32>
    %51 = vector.extract_strided_slice %9 {offsets = [8, 0], sizes = [1, 196], strides = [1, 1]} : vector<16x196xbf16> to vector<1x196xbf16>
    %c8 = arith.constant 8 : index
    %c0_34 = arith.constant 0 : index
    %c0_35 = arith.constant 0 : index
    %52 = vector.load %arg4[%c8, %c0_34, %c0_35] : memref<16x196x128xbf16, #tpu.memory_space<vmem>>, vector<1x196x128xbf16>
    %53 = vector.shape_cast %52 : vector<1x196x128xbf16> to vector<196x128xbf16>
    %cst_36 = arith.constant dense<0.000000e+00> : vector<1x128xf32>
    %54 = tpu.matmul %51, %53, %cst_36 {dimension_numbers = #tpu.dot_dimension_numbers<[1], [0], [0], [1], [0, 0, 1, 1], [], []>} : vector<1x196xbf16>, vector<196x128xbf16>, vector<1x128xf32> -> vector<1x128xf32>
    %55 = arith.addf %50, %54 : vector<1x128xf32>
    %56 = vector.extract_strided_slice %9 {offsets = [9, 0], sizes = [1, 196], strides = [1, 1]} : vector<16x196xbf16> to vector<1x196xbf16>
    %c9 = arith.constant 9 : index
    %c0_37 = arith.constant 0 : index
    %c0_38 = arith.constant 0 : index
    %57 = vector.load %arg4[%c9, %c0_37, %c0_38] : memref<16x196x128xbf16, #tpu.memory_space<vmem>>, vector<1x196x128xbf16>
    %58 = vector.shape_cast %57 : vector<1x196x128xbf16> to vector<196x128xbf16>
    %cst_39 = arith.constant dense<0.000000e+00> : vector<1x128xf32>
    %59 = tpu.matmul %56, %58, %cst_39 {dimension_numbers = #tpu.dot_dimension_numbers<[1], [0], [0], [1], [0, 0, 1, 1], [], []>} : vector<1x196xbf16>, vector<196x128xbf16>, vector<1x128xf32> -> vector<1x128xf32>
    %60 = arith.addf %55, %59 : vector<1x128xf32>
    %61 = vector.extract_strided_slice %9 {offsets = [10, 0], sizes = [1, 196], strides = [1, 1]} : vector<16x196xbf16> to vector<1x196xbf16>
    %c10 = arith.constant 10 : index
    %c0_40 = arith.constant 0 : index
    %c0_41 = arith.constant 0 : index
    %62 = vector.load %arg4[%c10, %c0_40, %c0_41] : memref<16x196x128xbf16, #tpu.memory_space<vmem>>, vector<1x196x128xbf16>
    %63 = vector.shape_cast %62 : vector<1x196x128xbf16> to vector<196x128xbf16>
    %cst_42 = arith.constant dense<0.000000e+00> : vector<1x128xf32>
    %64 = tpu.matmul %61, %63, %cst_42 {dimension_numbers = #tpu.dot_dimension_numbers<[1], [0], [0], [1], [0, 0, 1, 1], [], []>} : vector<1x196xbf16>, vector<196x128xbf16>, vector<1x128xf32> -> vector<1x128xf32>
    %65 = arith.addf %60, %64 : vector<1x128xf32>
    %66 = vector.extract_strided_slice %9 {offsets = [11, 0], sizes = [1, 196], strides = [1, 1]} : vector<16x196xbf16> to vector<1x196xbf16>
    %c11 = arith.constant 11 : index
    %c0_43 = arith.constant 0 : index
    %c0_44 = arith.constant 0 : index
    %67 = vector.load %arg4[%c11, %c0_43, %c0_44] : memref<16x196x128xbf16, #tpu.memory_space<vmem>>, vector<1x196x128xbf16>
    %68 = vector.shape_cast %67 : vector<1x196x128xbf16> to vector<196x128xbf16>
    %cst_45 = arith.constant dense<0.000000e+00> : vector<1x128xf32>
    %69 = tpu.matmul %66, %68, %cst_45 {dimension_numbers = #tpu.dot_dimension_numbers<[1], [0], [0], [1], [0, 0, 1, 1], [], []>} : vector<1x196xbf16>, vector<196x128xbf16>, vector<1x128xf32> -> vector<1x128xf32>
    %70 = arith.addf %65, %69 : vector<1x128xf32>
    %71 = vector.extract_strided_slice %9 {offsets = [12, 0], sizes = [1, 196], strides = [1, 1]} : vector<16x196xbf16> to vector<1x196xbf16>
    %c12 = arith.constant 12 : index
    %c0_46 = arith.constant 0 : index
    %c0_47 = arith.constant 0 : index
    %72 = vector.load %arg4[%c12, %c0_46, %c0_47] : memref<16x196x128xbf16, #tpu.memory_space<vmem>>, vector<1x196x128xbf16>
    %73 = vector.shape_cast %72 : vector<1x196x128xbf16> to vector<196x128xbf16>
    %cst_48 = arith.constant dense<0.000000e+00> : vector<1x128xf32>
    %74 = tpu.matmul %71, %73, %cst_48 {dimension_numbers = #tpu.dot_dimension_numbers<[1], [0], [0], [1], [0, 0, 1, 1], [], []>} : vector<1x196xbf16>, vector<196x128xbf16>, vector<1x128xf32> -> vector<1x128xf32>
    %75 = arith.addf %70, %74 : vector<1x128xf32>
    %76 = vector.extract_strided_slice %9 {offsets = [13, 0], sizes = [1, 196], strides = [1, 1]} : vector<16x196xbf16> to vector<1x196xbf16>
    %c13 = arith.constant 13 : index
    %c0_49 = arith.constant 0 : index
    %c0_50 = arith.constant 0 : index
    %77 = vector.load %arg4[%c13, %c0_49, %c0_50] : memref<16x196x128xbf16, #tpu.memory_space<vmem>>, vector<1x196x128xbf16>
    %78 = vector.shape_cast %77 : vector<1x196x128xbf16> to vector<196x128xbf16>
    %cst_51 = arith.constant dense<0.000000e+00> : vector<1x128xf32>
    %79 = tpu.matmul %76, %78, %cst_51 {dimension_numbers = #tpu.dot_dimension_numbers<[1], [0], [0], [1], [0, 0, 1, 1], [], []>} : vector<1x196xbf16>, vector<196x128xbf16>, vector<1x128xf32> -> vector<1x128xf32>
    %80 = arith.addf %75, %79 : vector<1x128xf32>
    %81 = vector.extract_strided_slice %9 {offsets = [14, 0], sizes = [1, 196], strides = [1, 1]} : vector<16x196xbf16> to vector<1x196xbf16>
    %c14 = arith.constant 14 : index
    %c0_52 = arith.constant 0 : index
    %c0_53 = arith.constant 0 : index
    %82 = vector.load %arg4[%c14, %c0_52, %c0_53] : memref<16x196x128xbf16, #tpu.memory_space<vmem>>, vector<1x196x128xbf16>
    %83 = vector.shape_cast %82 : vector<1x196x128xbf16> to vector<196x128xbf16>
    %cst_54 = arith.constant dense<0.000000e+00> : vector<1x128xf32>
    %84 = tpu.matmul %81, %83, %cst_54 {dimension_numbers = #tpu.dot_dimension_numbers<[1], [0], [0], [1], [0, 0, 1, 1], [], []>} : vector<1x196xbf16>, vector<196x128xbf16>, vector<1x128xf32> -> vector<1x128xf32>
    %85 = arith.addf %80, %84 : vector<1x128xf32>
    %86 = vector.extract_strided_slice %9 {offsets = [15, 0], sizes = [1, 196], strides = [1, 1]} : vector<16x196xbf16> to vector<1x196xbf16>
    %c15 = arith.constant 15 : index
    %c0_55 = arith.constant 0 : index
    %c0_56 = arith.constant 0 : index
    %87 = vector.load %arg4[%c15, %c0_55, %c0_56] : memref<16x196x128xbf16, #tpu.memory_space<vmem>>, vector<1x196x128xbf16>
    %88 = vector.shape_cast %87 : vector<1x196x128xbf16> to vector<196x128xbf16>
    %cst_57 = arith.constant dense<0.000000e+00> : vector<1x128xf32>
    %89 = tpu.matmul %86, %88, %cst_57 {dimension_numbers = #tpu.dot_dimension_numbers<[1], [0], [0], [1], [0, 0, 1, 1], [], []>} : vector<1x196xbf16>, vector<196x128xbf16>, vector<1x128xf32> -> vector<1x128xf32>
    %90 = arith.addf %85, %89 : vector<1x128xf32>
    %cst_58 = arith.constant 0.000000e+00 : f32
    %91 = vector.broadcast %cst_58 : f32 to vector<1x128xf32>
    %92 = arith.maximumf %90, %91 : vector<1x128xf32>
    %93 = arith.truncf %92 : vector<1x128xf32> to vector<1x128xbf16>
    %c0_59 = arith.constant 0 : index
    %c0_60 = arith.constant 0 : index
    %94 = vector.load %arg6[%c0_59, %c0_60] : memref<128x128xbf16, #tpu.memory_space<vmem>>, vector<128x128xbf16>
    %cst_61 = arith.constant dense<0.000000e+00> : vector<1x128xf32>
    %95 = tpu.matmul %93, %94, %cst_61 {dimension_numbers = #tpu.dot_dimension_numbers<[1], [0], [0], [1], [0, 0, 1, 1], [], []>} : vector<1x128xbf16>, vector<128x128xbf16>, vector<1x128xf32> -> vector<1x128xf32>
    %c0_62 = arith.constant 0 : index
    %c0_63 = arith.constant 0 : index
    %96 = vector.load %arg7[%c0_62, %c0_63] : memref<1x128xf32, #tpu.memory_space<vmem>>, vector<1x128xf32>
    %97 = arith.addf %95, %96 : vector<1x128xf32>
    %cst_64 = arith.constant 0.000000e+00 : f32
    %98 = vector.broadcast %cst_64 : f32 to vector<1x128xf32>
    %99 = arith.maximumf %97, %98 : vector<1x128xf32>
    %c0_65 = arith.constant 0 : index
    %c0_66 = arith.constant 0 : index
    %c0_67 = arith.constant 0 : index
    %100 = vector.load %arg8[%c0_65, %c0_66, %c0_67] : memref<1x1x128xf32, #tpu.memory_space<vmem>>, vector<1x1x128xf32>
    %101 = vector.shape_cast %100 : vector<1x1x128xf32> to vector<1x128xf32>
    %102 = vector.shape_cast %99 : vector<1x128xf32> to vector<1x1x128xf32>
    tpu.vector_store %arg8[%c0_65, %c0_66, %c0_67], %102 {strides = array<i32>} : memref<1x1x128xf32, #tpu.memory_space<vmem>>, vector<1x1x128xf32>,
    return
  }
  func.func @transform_0(%arg0: i32) -> (i32, i32, i32) {
    %c0_i32 = arith.constant 0 : i32
    %c0_i32_0 = arith.constant 0 : i32
    %c0_i32_1 = arith.constant 0 : i32
    return %arg0, %c0_i32, %c0_i32_0 : i32, i32, i32
  }
  func.func @transform_1(%arg0: i32) -> (i32, i32) {
    %c0_i32 = arith.constant 0 : i32
    %c0_i32_0 = arith.constant 0 : i32
    %c0_i32_1 = arith.constant 0 : i32
    return %c0_i32, %c0_i32_0 : i32, i32
  }
  func.func @transform_2(%arg0: i32) -> (i32, i32) {
    %c0_i32 = arith.constant 0 : i32
    %c0_i32_0 = arith.constant 0 : i32
    %c0_i32_1 = arith.constant 0 : i32
    return %c0_i32, %c0_i32_0 : i32, i32
  }
  func.func @transform_3(%arg0: i32) -> (i32, i32, i32) {
    %c0_i32 = arith.constant 0 : i32
    %c0_i32_0 = arith.constant 0 : i32
    %c0_i32_1 = arith.constant 0 : i32
    %c0_i32_2 = arith.constant 0 : i32
    return %c0_i32, %c0_i32_0, %c0_i32_1 : i32, i32, i32
  }
  func.func @transform_4(%arg0: i32) -> (i32, i32) {
    %c0_i32 = arith.constant 0 : i32
    %c0_i32_0 = arith.constant 0 : i32
    %c0_i32_1 = arith.constant 0 : i32
    return %c0_i32, %c0_i32_0 : i32, i32
  }
  func.func @transform_5(%arg0: i32) -> (i32, i32) {
    %c0_i32 = arith.constant 0 : i32
    %c0_i32_0 = arith.constant 0 : i32
    %c0_i32_1 = arith.constant 0 : i32
    return %c0_i32, %c0_i32_0 : i32, i32
  }
  func.func @transform_6(%arg0: i32) -> (i32, i32) {
    %c0_i32 = arith.constant 0 : i32
    %c0_i32_0 = arith.constant 0 : i32
    %c0_i32_1 = arith.constant 0 : i32
    return %c0_i32, %c0_i32_0 : i32, i32
  }
  func.func @transform_7(%arg0: i32) -> (i32, i32, i32) {
    %c0_i32 = arith.constant 0 : i32
    %c0_i32_0 = arith.constant 0 : i32
    %c0_i32_1 = arith.constant 0 : i32
    return %arg0, %c0_i32, %c0_i32_0 : i32, i32, i32
  }
}

</mosaic_0001>

<llo_original>
// kernel: _forward_impl.1
$region0: #{_forward_impl.1}
  #allocation0 [shape = 'u32[]', space=smem, size = 0x4, offset = 0x4, fixed_abs, tag = 'smem constant byte address 0x4 - core index']
  #allocation1 [shape = 'u32[144,128]{1,0:T(1,128)}', space=vmem, size = 0x12000, scoped, tag = 'internal scratch']
  %s0 = inlined_call_operand.vmem [shape: bf16[2,36,196], index: 0, kind: input, shape index: {}]
  %s1 = inlined_call_operand.vmem [shape: bf16[16,36], index: 1, kind: input, shape index: {}]
  %s2 = inlined_call_operand.vmem [shape: f32[16,1], index: 2, kind: input, shape index: {}]
  %s3 = inlined_call_operand.vmem [shape: bf16[16,196,128], index: 3, kind: input, shape index: {}]
  %s4 = inlined_call_operand.vmem [shape: f32[1,128], index: 4, kind: input, shape index: {}]
  %s5 = inlined_call_operand.vmem [shape: bf16[128,128], index: 5, kind: input, shape index: {}]
  %s6 = inlined_call_operand.vmem [shape: f32[1,128], index: 6, kind: input, shape index: {}]
  %s7 = inlined_call_operand.hbm [shape: f32[2,1,128], index: 7, kind: output, shape index: {}]
  %s8 = sld [smem:[#allocation0]]
  $region61: #{_forward_impl.1} parent=0
    _
  %s10 = ssub.s32 1, %s8
  %s11 = scalar_select 0, %s10, %s8
  $region1: #{_forward_impl.1} parent=0
    #allocation2 [shape = 'u8[1024]{0}', space=vmem, size = 0x400, scoped, tag = 'output window, operand 0']
    #allocation3 [shape = 's32[2]{0}', space=sflag, size = 0x8, scoped, tag = 'scoped memory for _forward_impl.1']
    %12 = vsyncpa [#allocation3], 0
    %s13 = scalar_lea.sflag [#allocation3], 1
    %14 = vsyncpa %s13, 0
    loop: start=0, step=1, limit=4
    $region2: #{_forward_impl.1} parent=1 // loop_pre_header
      _
    $region3: #{_forward_impl.1} parent=1 // loop_header
      %s16 = sphi 0, %s20
      %p17 = scmp.ge.s32.totalorder %s16, 4
      %s26 = sphi 0, %s28
      %s29 = sphi 0, %s26
      %s30 = sphi 0, %s29
      %s46 = sphi 0, %s30
      %s50 = sphi 0, %s50
      %s52 = sphi 0, %s50
      %s53 = sphi 0, %s52
      %s67 = sphi 0, %s53
      %s71 = sphi 0, %s71
      %s73 = sphi 0, %s71
      %s74 = sphi 0, %s73
      %s88 = sphi 0, %s74
      %s92 = sphi 0, %s92
      %s94 = sphi 0, %s92
      %s95 = sphi 0, %s94
      %s109 = sphi 0, %s95
      %s113 = sphi 0, %s113
      %s115 = sphi 0, %s113
      %s116 = sphi 0, %s115
      %s130 = sphi 0, %s116
      %s134 = sphi 0, %s134
      %s136 = sphi 0, %s134
      %s137 = sphi 0, %s136
      %s151 = sphi 0, %s137
      %s155 = sphi 0, %s155
      %s157 = sphi 0, %s155
      %s158 = sphi 0, %s157
      %s172 = sphi 0, %s158
      %s178 = sphi 0, %s180
      %s181 = sphi 0, %s178
      %s182 = sphi 0, %s181
      %s198 = sphi 0, %s182
    $region4: #{_forward_impl.1} parent=1 // loop_header_branch
      %19 = sbr.rel (%p17) target = $region8
    $region5: #{_forward_impl.1} parent=1 // loop_body
      %s21 = ssub.s32 %s16, 1
      %s22 = ssub.s32 %s16, 2
      %s23 = sadd.s32 %s16, 1
      %s24 = ssub.s32 %s16, %s23
      %p25 = scmp.eq.s32.totalorder %s24, 0
      %s27 = sadd.s32 %s26, 1
      %s28 = scalar_select %p25, %s26, %s27
      %p31 = pneg %p25
      %p32 = scmp.eq.s32.totalorder %s16, 1
      %p33 = por %p31, %p32
      %p34 = scmp.ne.s32.totalorder %s26, %s29
      %p35 = scmp.eq.s32.totalorder %s16, 0
      %p36 = por %p34, %p35
      %p37 = scmp.ne.s32.totalorder %s26, %s29
      %p38 = scmp.eq.s32.totalorder %s21, 1
      %p39 = por %p37, %p38
      %p40 = scmp.ne.s32.totalorder %s29, %s30
      %p41 = scmp.eq.s32.totalorder %s21, 0
      %p42 = por %p40, %p41
      %p43 = scmp.ne.s32.totalorder %s29, %s30
      %p44 = scmp.eq.s32.totalorder %s22, 1
      %p45 = por %p43, %p44
      %p47 = scmp.ne.s32.totalorder %s30, %s46
      %p48 = scmp.eq.s32.totalorder %s22, 0
      %p49 = por %p47, %p48
      %s51 = sadd.s32 %s50, 1
      %p54 = scmp.eq.s32.totalorder %s16, 1
      %p55 = scmp.ne.s32.totalorder %s50, %s52
      %p56 = scmp.eq.s32.totalorder %s16, 0
      %p57 = por %p55, %p56
      %p58 = scmp.ne.s32.totalorder %s50, %s52
      %p59 = scmp.eq.s32.totalorder %s21, 1
      %p60 = por %p58, %p59
      %p61 = scmp.ne.s32.totalorder %s52, %s53
      %p62 = scmp.eq.s32.totalorder %s21, 0
      %p63 = por %p61, %p62
      %p64 = scmp.ne.s32.totalorder %s52, %s53
      %p65 = scmp.eq.s32.totalorder %s22, 1
      %p66 = por %p64, %p65
      %p68 = scmp.ne.s32.totalorder %s53, %s67
      %p69 = scmp.eq.s32.totalorder %s22, 0
      %p70 = por %p68, %p69
      %s72 = sadd.s32 %s71, 1
      %p75 = scmp.eq.s32.totalorder %s16, 1
      %p76 = scmp.ne.s32.totalorder %s71, %s73
      %p77 = scmp.eq.s32.totalorder %s16, 0
      %p78 = por %p76, %p77
      %p79 = scmp.ne.s32.totalorder %s71, %s73
      %p80 = scmp.eq.s32.totalorder %s21, 1
      %p81 = por %p79, %p80
      %p82 = scmp.ne.s32.totalorder %s73, %s74
      %p83 = scmp.eq.s32.totalorder %s21, 0
      %p84 = por %p82, %p83
      %p85 = scmp.ne.s32.totalorder %s73, %s74
      %p86 = scmp.eq.s32.totalorder %s22, 1
      %p87 = por %p85, %p86
      %p89 = scmp.ne.s32.totalorder %s74, %s88
      %p90 = scmp.eq.s32.totalorder %s22, 0
      %p91 = por %p89, %p90
      %s93 = sadd.s32 %s92, 1
      %p96 = scmp.eq.s32.totalorder %s16, 1
      %p97 = scmp.ne.s32.totalorder %s92, %s94
      %p98 = scmp.eq.s32.totalorder %s16, 0
      %p99 = por %p97, %p98
      %p100 = scmp.ne.s32.totalorder %s92, %s94
      %p101 = scmp.eq.s32.totalorder %s21, 1
      %p102 = por %p100, %p101
      %p103 = scmp.ne.s32.totalorder %s94, %s95
      %p104 = scmp.eq.s32.totalorder %s21, 0
      %p105 = por %p103, %p104
      %p106 = scmp.ne.s32.totalorder %s94, %s95
      %p107 = scmp.eq.s32.totalorder %s22, 1
      %p108 = por %p106, %p107
      %p110 = scmp.ne.s32.totalorder %s95, %s109
      %p111 = scmp.eq.s32.totalorder %s22, 0
      %p112 = por %p110, %p111
      %s114 = sadd.s32 %s113, 1
      %p117 = scmp.eq.s32.totalorder %s16, 1
      %p118 = scmp.ne.s32.totalorder %s113, %s115
      %p119 = scmp.eq.s32.totalorder %s16, 0
      %p120 = por %p118, %p119
      %p121 = scmp.ne.s32.totalorder %s113, %s115
      %p122 = scmp.eq.s32.totalorder %s21, 1
      %p123 = por %p121, %p122
      %p124 = scmp.ne.s32.totalorder %s115, %s116
      %p125 = scmp.eq.s32.totalorder %s21, 0
      %p126 = por %p124, %p125
      %p127 = scmp.ne.s32.totalorder %s115, %s116
      %p128 = scmp.eq.s32.totalorder %s22, 1
      %p129 = por %p127, %p128
      %p131 = scmp.ne.s32.totalorder %s116, %s130
      %p132 = scmp.eq.s32.totalorder %s22, 0
      %p133 = por %p131, %p132
      %s135 = sadd.s32 %s134, 1
      %p138 = scmp.eq.s32.totalorder %s16, 1
      %p139 = scmp.ne.s32.totalorder %s134, %s136
      %p140 = scmp.eq.s32.totalorder %s16, 0
      %p141 = por %p139, %p140
      %p142 = scmp.ne.s32.totalorder %s134, %s136
      %p143 = scmp.eq.s32.totalorder %s21, 1
      %p144 = por %p142, %p143
      %p145 = scmp.ne.s32.totalorder %s136, %s137
      %p146 = scmp.eq.s32.totalorder %s21, 0
      %p147 = por %p145, %p146
      %p148 = scmp.ne.s32.totalorder %s136, %s137
      %p149 = scmp.eq.s32.totalorder %s22, 1
      %p150 = por %p148, %p149
      %p152 = scmp.ne.s32.totalorder %s137, %s151
      %p153 = scmp.eq.s32.totalorder %s22, 0
      %p154 = por %p152, %p153
      %s156 = sadd.s32 %s155, 1
      %p159 = scmp.eq.s32.totalorder %s16, 1
      %p160 = scmp.ne.s32.totalorder %s155, %s157
      %p161 = scmp.eq.s32.totalorder %s16, 0
      %p162 = por %p160, %p161
      %p163 = scmp.ne.s32.totalorder %s155, %s157
      %p164 = scmp.eq.s32.totalorder %s21, 1
      %p165 = por %p163, %p164
      %p166 = scmp.ne.s32.totalorder %s157, %s158
      %p167 = scmp.eq.s32.totalorder %s21, 0
      %p168 = por %p166, %p167
      %p169 = scmp.ne.s32.totalorder %s157, %s158
      %p170 = scmp.eq.s32.totalorder %s22, 1
      %p171 = por %p169, %p170
      %p173 = scmp.ne.s32.totalorder %s158, %s172
      %p174 = scmp.eq.s32.totalorder %s22, 0
      %p175 = por %p173, %p174
      %s176 = ssub.s32 %s16, %s23
      %p177 = scmp.eq.s32.totalorder %s176, 0
      %s179 = sadd.s32 %s178, 1
      %s180 = scalar_select %p177, %s178, %s179
      %p183 = pneg %p177
      %p184 = scmp.eq.s32.totalorder %s16, 1
      %p185 = por %p183, %p184
      %p186 = scmp.ne.s32.totalorder %s178, %s181
      %p187 = scmp.eq.s32.totalorder %s16, 0
      %p188 = por %p186, %p187
      %p189 = scmp.ne.s32.totalorder %s178, %s181
      %p190 = scmp.eq.s32.totalorder %s21, 1
      %p191 = por %p189, %p190
      %p192 = scmp.ne.s32.totalorder %s181, %s182
      %p193 = scmp.eq.s32.totalorder %s21, 0
      %p194 = por %p192, %p193
      %p195 = scmp.ne.s32.totalorder %s181, %s182
      %p196 = scmp.eq.s32.totalorder %s22, 1
      %p197 = por %p195, %p196
      %p199 = scmp.ne.s32.totalorder %s182, %s198
      %p200 = scmp.eq.s32.totalorder %s22, 0
      %p201 = por %p199, %p200
      %p202 = scmp.le.s32.totalorder 1, %s16
      %p203 = scmp.lt.s32.totalorder %s16, 3
      %p204 = pnand %p202, %p203
      %p205 = pneg %p204
      // Predicated region
      $region9: #{_forward_impl.1} parent=5 // pred_check
        _
      $region10: #{_forward_impl.1} parent=5 // pred_check_branch
        %207 = sbr.rel (%p204) target = $region12
      $region11: #{_forward_impl.1} parent=5 // pred_region
        %s208 = ssub.s32 %s16, 1
        // Predicated region
        $region13: #{_forward_impl.1} parent=11 // pred_check
          %p209 = pneg %p63
        $region14: #{_forward_impl.1} parent=11 // pred_check_branch
          %211 = sbr.rel (%p209) target = $region16
        $region15: #{_forward_impl.1} parent=11 // pred_region
          _
        $region16: #{_forward_impl.1} parent=11 // pred_fallthru
          _
        // Predicated region
        $region17: #{_forward_impl.1} parent=11 // pred_check
          %p212 = pneg %p84
        $region18: #{_forward_impl.1} parent=11 // pred_check_branch
          %214 = sbr.rel (%p212) target = $region20
        $region19: #{_forward_impl.1} parent=11 // pred_region
          _
        $region20: #{_forward_impl.1} parent=11 // pred_fallthru
          _
        // Predicated region
        $region21: #{_forward_impl.1} parent=11 // pred_check
          %p215 = pneg %p105
        $region22: #{_forward_impl.1} parent=11 // pred_check_branch
          %217 = sbr.rel (%p215) target = $region24
        $region23: #{_forward_impl.1} parent=11 // pred_region
          _
        $region24: #{_forward_impl.1} parent=11 // pred_fallthru
          _
        // Predicated region
        $region25: #{_forward_impl.1} parent=11 // pred_check
          %p218 = pneg %p126
        $region26: #{_forward_impl.1} parent=11 // pred_check_branch
          %220 = sbr.rel (%p218) target = $region28
        $region27: #{_forward_impl.1} parent=11 // pred_region
          _
        $region28: #{_forward_impl.1} parent=11 // pred_fallthru
          _
        // Predicated region
        $region29: #{_forward_impl.1} parent=11 // pred_check
          %p221 = pneg %p147
        $region30: #{_forward_impl.1} parent=11 // pred_check_branch
          %223 = sbr.rel (%p221) target = $region32
        $region31: #{_forward_impl.1} parent=11 // pred_region
          _
        $region32: #{_forward_impl.1} parent=11 // pred_fallthru
          _
        // Predicated region
        $region33: #{_forward_impl.1} parent=11 // pred_check
          %p224 = pneg %p168
        $region34: #{_forward_impl.1} parent=11 // pred_check_branch
          %226 = sbr.rel (%p224) target = $region36
        $region35: #{_forward_impl.1} parent=11 // pred_region
          _
        $region36: #{_forward_impl.1} parent=11 // pred_fallthru
          _
      $region12: #{_forward_impl.1} parent=5 // pred_fallthru
        _
      %p227 = scmp.lt.s32.totalorder %s16, 2
      // Predicated region
      $region37: #{_forward_impl.1} parent=5 // pred_check
        %p228 = pneg %p227
      $region38: #{_forward_impl.1} parent=5 // pred_check_branch
        %230 = sbr.rel (%p228) target = $region40
      $region39: #{_forward_impl.1} parent=5 // pred_region
        // Predicated region
        $region41: #{_forward_impl.1} parent=39 // pred_check
          %p231 = pneg %p36
        $region42: #{_forward_impl.1} parent=39 // pred_check_branch
          %233 = sbr.rel (%p231) target = $region44
        $region43: #{_forward_impl.1} parent=39 // pred_region
          %p234 = scmp.lt.s32.totalorder %s16, 1
          %s235 = scalar_select %p234, %s16, 1
          %s236 = smul.addr %s235, 10
          %s237 = smul.addr %s236, 4
          %s238 = scalar_lea.vmem %s0, %s237
        $region44: #{_forward_impl.1} parent=39 // pred_fallthru
          _
      $region40: #{_forward_impl.1} parent=5 // pred_fallthru
        _
      %p239 = scmp.le.s32.totalorder 1, %s16
      %p240 = scmp.lt.s32.totalorder %s16, 3
      %p241 = pnand %p239, %p240
      %p242 = pneg %p241
      // Predicated region
      $region45: #{_forward_impl.1} parent=5 // pred_check
        _
      $region46: #{_forward_impl.1} parent=5 // pred_check_branch
        %244 = sbr.rel (%p241) target = $region48
      $region47: #{_forward_impl.1} parent=5 // pred_region
        %s245 = ssub.s32 %s16, 1
        %p246 = scmp.lt.s32.totalorder %s21, 1
        %s247 = scalar_select %p246, %s21, 1
        %s248 = smul.addr %s247, 10
        %s249 = smul.addr %s248, 4
        %s250 = scalar_lea.vmem %s0, %s249
        %p251 = pneg %p42
        %p252 = pneg %p39
        %p253 = pneg %p63
        %p254 = pneg %p60
        %p255 = pneg %p84
        %p256 = pneg %p81
        %p257 = pneg %p105
        %p258 = pneg %p102
        %p259 = pneg %p126
        %p260 = pneg %p123
        %p261 = pneg %p147
        %p262 = pneg %p144
        %p263 = pneg %p168
        %p264 = pneg %p165
        %p265 = pneg %p194
        %p266 = pneg %p191
        %s267 = sand.u32 %s181, 1
        %s268 = scalar_lea.sflag [#allocation3], %s267
        %s269 = sand.u32 %s181, 1
        %s270 = scalar_lea.vmem [#allocation2], %s269
        %p271 = scmp.lt.s32.totalorder %s21, 1
        %s272 = scalar_select %p271, %s21, 1
        %s273 = smul.addr %s272, 10
        %s274 = smul.addr %s273, 4
        %s275 = scalar_lea.vmem %s0, %s274
        %v277 = vld [vmem:[%s275] sm:$0xff]
        %v278 = vld [vmem:[%s275 + $0x8] sm:$0xff]
        %v279 = vld [vmem:[%s275 + $0x10] sm:$0xff]
        %v280 = vld [vmem:[%s275 + $0x18] sm:$0xff]
        %v281 = vld [vmem:[%s275 + $0x20] sm:$0x33]
        %v282 = vld [vmem:[%s1] sm:$0xf]
        %v283 = vld [vmem:[%s1 + $0x4] sm:$0xf]
        %v284 = vld [vmem:[%s2] sm:$0xff]
        %v285 = vld [vmem:[%s2 + $0x8] sm:$0xff]
        %287 = vset.pattern.permute.xlu0 0
        %288 = vperm.xlu0 %287, %v284
        %v289 = vpop.permute.xlu0 %288
        %292 = vset.pattern.permute.xlu0 0
        %293 = vperm.xlu0 %292, %v285
        %v294 = vpop.permute.xlu0 %293
        %v298 = vunpack.c.l.b16 %v282
        %v299 = vunpack.c.l.b16 %v283
        %v300 = vpack.c.b16 %v299, %v298
        %v306 = vunpack.c.l.b16 %v277
        %v307 = vunpack.c.h.b16 %v277
        %v308 = vunpack.c.l.b16 %v278
        %v309 = vunpack.c.h.b16 %v278
        %v310 = vunpack.c.l.b16 %v279
        %v311 = vunpack.c.h.b16 %v279
        %v312 = vunpack.c.l.b16 %v280
        %v313 = vunpack.c.h.b16 %v280
        %v314 = vunpack.c.l.b16 %v281
        %v315 = vunpack.c.h.b16 %v281
        %v316 = vpack.c.b16 %v308, %v306
        %v317 = vpack.c.b16 %v309, %v307
        %v318 = vpack.c.b16 %v312, %v310
        %v319 = vpack.c.b16 %v313, %v311
        %v320 = vpack.c.b16 %v314, %v314
        %v321 = vpack.c.b16 %v315, %v315
        %vm326 = vcmask 293888
        %v328 = vsel %vm326, %v300, 0
        %vm330 = vcmask 1041408
        %v332 = vsel %vm330, %v320, 0
        %v335 = vsel %vm330, %v321, 0
        %337 = vmatprep.subr.bf16.mxu0 %v317
        %338 = vmatpush1.bf16.msra.mxu0 %v316
        %339 = vmatprep.subr.bf16.mxu0 %v319
        %340 = vmatpush1.bf16.msra.mxu0 %v318
        %341 = vmatprep.subr.bf16.mxu0 %v335
        %342 = vmatpush1.bf16.msra.mxu0 %v332
        %343 = vmatprep.subr.bf16.mxu0 0
        %344 = vmatpush1.bf16.msra.mxu0 0
        %345 = vmatprep.subr.bf16.mxu0 0
        %346 = vmatpush1.bf16.msra.mxu0 0
        %347 = vmatprep.subr.bf16.mxu0 0
        %348 = vmatpush1.bf16.msra.mxu0 0
        %349 = vmatprep.subr.bf16.mxu0 0
        %350 = vmatpush1.bf16.msra.mxu0 0
        %351 = vmatprep.subr.bf16.mxu0 0
        %352 = vmatpush1.bf16.msra.mxu0 0
        %353 = vmatprep.subr.bf16.mxu0 0
        %354 = vmatpush1.bf16.msra.mxu0 0
        %355 = vmatprep.subr.bf16.mxu0 0
        %356 = vmatpush1.bf16.msra.mxu0 0
        %357 = vmatprep.subr.bf16.mxu0 0
        %358 = vmatpush1.bf16.msra.mxu0 0
        %359 = vmatprep.subr.bf16.mxu0 0
        %360 = vmatpush1.bf16.msra.mxu0 0
        %361 = vmatprep.subr.bf16.mxu0 0
        %362 = vmatpush1.bf16.msra.mxu0 0
        %363 = vmatprep.subr.bf16.mxu0 0
        %364 = vmatpush1.bf16.msra.mxu0 0
        %365 = vmatprep.subr.bf16.mxu0 0
        %366 = vmatpush1.bf16.msra.mxu0 0
        %367 = vmatprep.subr.bf16.mxu0 0
        %368 = vmatpush1.bf16.msra.mxu0 0
        %369 = vmatprep.mubr.bf16.mxu0 0
        %370 = vmatmul.mubr.bf16.gmra.mrb[0].mxu0 %v328
        %v371 = vpop.f32.mrb[0].mxu0
        %v372 = vadd.f32 %v289, %v371
        %v373 = vpop.f32.mrb[0].mxu0
        %v374 = vadd.f32 %v289, %v373
        %v375 = vpop.f32.mrb[0].mxu0
        %v376 = vadd.f32 %v294, %v375
        %v377 = vpop.f32.mrb[0].mxu0
        %v378 = vadd.f32 %v294, %v377
        %379 = vdwg.mxu0
        %v380 = vmax.f32 %v372, 0.0
        %v381 = vmax.f32 %v374, 0.0
        %v382 = vmax.f32 %v376, 0.0
        %v383 = vmax.f32 %v378, 0.0
        %v384 = vpack.c.bf16 %v382, %v380
        %v385 = vpack.c.bf16 %v383, %v381
        %v386 = vld [vmem:[%s4] sm:$0x1]
        %v387 = vld [vmem:[%s3] sm:$0xf]
        %v388 = vld [vmem:[%s3 + $0x4] sm:$0xf]
        %v389 = vld [vmem:[%s3 + $0x8] sm:$0xf]
        %v390 = vld [vmem:[%s3 + $0xc] sm:$0xf]
        %v391 = vld [vmem:[%s3 + $0x10] sm:$0xf]
        %v392 = vld [vmem:[%s3 + $0x14] sm:$0xf]
        %v393 = vld [vmem:[%s3 + $0x18] sm:$0xf]
        %v394 = vld [vmem:[%s3 + $0x1c] sm:$0xf]
        %v395 = vld [vmem:[%s3 + $0x20] sm:$0xf]
        %v396 = vld [vmem:[%s3 + $0x24] sm:$0xf]
        %v397 = vld [vmem:[%s3 + $0x28] sm:$0xf]
        %v398 = vld [vmem:[%s3 + $0x2c] sm:$0xf]
        %v399 = vld [vmem:[%s3 + $0x30] sm:$0xf]
        %v400 = vld [vmem:[%s3 + $0x34] sm:$0xf]
        %v401 = vld [vmem:[%s3 + $0x38] sm:$0xf]
        %v402 = vld [vmem:[%s3 + $0x3c] sm:$0xf]
        %v403 = vld [vmem:[%s3 + $0x40] sm:$0xf]
        %v404 = vld [vmem:[%s3 + $0x44] sm:$0xf]
        %v405 = vld [vmem:[%s3 + $0x48] sm:$0xf]
        %v406 = vld [vmem:[%s3 + $0x4c] sm:$0xf]
        %v407 = vld [vmem:[%s3 + $0x50] sm:$0xf]
        %v408 = vld [vmem:[%s3 + $0x54] sm:$0xf]
        %v409 = vld [vmem:[%s3 + $0x58] sm:$0xf]
        %v410 = vld [vmem:[%s3 + $0x5c] sm:$0xf]
        %v411 = vld [vmem:[%s3 + $0x60] sm:$0x3]
        %v437 = vunpack.c.l.b16 %v387
        %v438 = vunpack.c.l.b16 %v388
        %v439 = vunpack.c.l.b16 %v389
        %v440 = vunpack.c.l.b16 %v390
        %v441 = vunpack.c.l.b16 %v391
        %v442 = vunpack.c.l.b16 %v392
        %v443 = vunpack.c.l.b16 %v393
        %v444 = vunpack.c.l.b16 %v394
        %v445 = vunpack.c.l.b16 %v395
        %v446 = vunpack.c.l.b16 %v396
        %v447 = vunpack.c.l.b16 %v397
        %v448 = vunpack.c.l.b16 %v398
        %v449 = vunpack.c.l.b16 %v399
        %v450 = vunpack.c.l.b16 %v400
        %v451 = vunpack.c.l.b16 %v401
        %v452 = vunpack.c.l.b16 %v402
        %v453 = vunpack.c.l.b16 %v403
        %v454 = vunpack.c.l.b16 %v404
        %v455 = vunpack.c.l.b16 %v405
        %v456 = vunpack.c.l.b16 %v406
        %v457 = vunpack.c.l.b16 %v407
        %v458 = vunpack.c.l.b16 %v408
        %v459 = vunpack.c.l.b16 %v409
        %v460 = vunpack.c.l.b16 %v410
        %v461 = vunpack.c.l.b16 %v411
        %v462 = vpack.c.b16 %v438, %v437
        %v463 = vpack.c.b16 %v440, %v439
        %v464 = vpack.c.b16 %v442, %v441
        %v465 = vpack.c.b16 %v444, %v443
        %v466 = vpack.c.b16 %v446, %v445
        %v467 = vpack.c.b16 %v448, %v447
        %v468 = vpack.c.b16 %v450, %v449
        %v469 = vpack.c.b16 %v452, %v451
        %v470 = vpack.c.b16 %v454, %v453
        %v471 = vpack.c.b16 %v456, %v455
        %v472 = vpack.c.b16 %v458, %v457
        %v473 = vpack.c.b16 %v460, %v459
        %v474 = vpack.c.b16 %v461, %v461
        %vm487 = vcmask 556032
        %v489 = vsel %vm487, %v385, 0
        %v492 = vsel %vm330, %v474, 0
        %494 = vmatprep.subr.bf16.mxu0 0
        %495 = vmatpush1.bf16.msra.mxu0 %v462
        %496 = vmatprep.subr.bf16.mxu0 0
        %497 = vmatpush1.bf16.msra.mxu0 %v463
        %498 = vmatprep.subr.bf16.mxu0 0
        %499 = vmatpush1.bf16.msra.mxu0 %v464
        %500 = vmatprep.subr.bf16.mxu0 0
        %501 = vmatpush1.bf16.msra.mxu0 %v465
        %502 = vmatprep.subr.bf16.mxu0 0
        %503 = vmatpush1.bf16.msra.mxu0 %v466
        %504 = vmatprep.subr.bf16.mxu0 0
        %505 = vmatpush1.bf16.msra.mxu0 %v467
        %506 = vmatprep.subr.bf16.mxu0 0
        %507 = vmatpush1.bf16.msra.mxu0 %v468
        %508 = vmatprep.subr.bf16.mxu0 0
        %509 = vmatpush1.bf16.msra.mxu0 %v469
        %510 = vmatprep.subr.bf16.mxu0 0
        %511 = vmatpush1.bf16.msra.mxu0 %v470
        %512 = vmatprep.subr.bf16.mxu0 0
        %513 = vmatpush1.bf16.msra.mxu0 %v471
        %514 = vmatprep.subr.bf16.mxu0 0
        %515 = vmatpush1.bf16.msra.mxu0 %v472
        %516 = vmatprep.subr.bf16.mxu0 0
        %517 = vmatpush1.bf16.msra.mxu0 %v473
        %518 = vmatprep.subr.bf16.mxu0 0
        %519 = vmatpush1.bf16.msra.mxu0 %v492
        %520 = vmatprep.subr.bf16.mxu0 0
        %521 = vmatpush1.bf16.msra.mxu0 0
        %522 = vmatprep.subr.bf16.mxu0 0
        %523 = vmatpush1.bf16.msra.mxu0 0
        %524 = vmatprep.subr.bf16.mxu0 0
        %525 = vmatpush1.bf16.msra.mxu0 0
        %526 = vmatprep.mubr.bf16.mxu0 %v489
        %527 = vmatmul.mubr.bf16.gmra.mrb[0].mxu0 %v384
        %v528 = vpop.f32.mrb[0].mxu0
        %v529 = vadd.f32 0.0, %v528
        %v530 = vpop.f32.mrb[0].mxu0
        %v531 = vpop.f32.mrb[0].mxu0
        %v532 = vpop.f32.mrb[0].mxu0
        %533 = vdwg.mxu0
        %v534 = vadd.f32 %v386, %v529
        %s535 = scalar_lea.vmem %s3, 100
        %v536 = vld [vmem:[%s535] sm:$0xf]
        %v537 = vld [vmem:[%s535 + $0x4] sm:$0xf]
        %v538 = vld [vmem:[%s535 + $0x8] sm:$0xf]
        %v539 = vld [vmem:[%s535 + $0xc] sm:$0xf]
        %v540 = vld [vmem:[%s535 + $0x10] sm:$0xf]
        %v541 = vld [vmem:[%s535 + $0x14] sm:$0xf]
        %v542 = vld [vmem:[%s535 + $0x18] sm:$0xf]
        %v543 = vld [vmem:[%s535 + $0x1c] sm:$0xf]
        %v544 = vld [vmem:[%s535 + $0x20] sm:$0xf]
        %v545 = vld [vmem:[%s535 + $0x24] sm:$0xf]
        %v546 = vld [vmem:[%s535 + $0x28] sm:$0xf]
        %v547 = vld [vmem:[%s535 + $0x2c] sm:$0xf]
        %v548 = vld [vmem:[%s535 + $0x30] sm:$0xf]
        %v549 = vld [vmem:[%s535 + $0x34] sm:$0xf]
        %v550 = vld [vmem:[%s535 + $0x38] sm:$0xf]
        %v551 = vld [vmem:[%s535 + $0x3c] sm:$0xf]
        %v552 = vld [vmem:[%s535 + $0x40] sm:$0xf]
        %v553 = vld [vmem:[%s535 + $0x44] sm:$0xf]
        %v554 = vld [vmem:[%s535 + $0x48] sm:$0xf]
        %v555 = vld [vmem:[%s535 + $0x4c] sm:$0xf]
        %v556 = vld [vmem:[%s535 + $0x50] sm:$0xf]
        %v557 = vld [vmem:[%s535 + $0x54] sm:$0xf]
        %v558 = vld [vmem:[%s535 + $0x58] sm:$0xf]
        %v559 = vld [vmem:[%s535 + $0x5c] sm:$0xf]
        %v560 = vld [vmem:[%s535 + $0x60] sm:$0x3]
        %v562 = vshrl.u32 %v384, 16
        %v564 = vshrl.u32 %v385, 16
        %v592 = vunpack.c.l.b16 %v536
        %v593 = vunpack.c.l.b16 %v537
        %v594 = vunpack.c.l.b16 %v538
        %v595 = vunpack.c.l.b16 %v539
        %v596 = vunpack.c.l.b16 %v540
        %v597 = vunpack.c.l.b16 %v541
        %v598 = vunpack.c.l.b16 %v542
        %v599 = vunpack.c.l.b16 %v543
        %v600 = vunpack.c.l.b16 %v544
        %v601 = vunpack.c.l.b16 %v545
        %v602 = vunpack.c.l.b16 %v546
        %v603 = vunpack.c.l.b16 %v547
        %v604 = vunpack.c.l.b16 %v548
        %v605 = vunpack.c.l.b16 %v549
        %v606 = vunpack.c.l.b16 %v550
        %v607 = vunpack.c.l.b16 %v551
        %v608 = vunpack.c.l.b16 %v552
        %v609 = vunpack.c.l.b16 %v553
        %v610 = vunpack.c.l.b16 %v554
        %v611 = vunpack.c.l.b16 %v555
        %v612 = vunpack.c.l.b16 %v556
        %v613 = vunpack.c.l.b16 %v557
        %v614 = vunpack.c.l.b16 %v558
        %v615 = vunpack.c.l.b16 %v559
        %v616 = vunpack.c.l.b16 %v560
        %v617 = vpack.c.b16 %v593, %v592
        %v618 = vpack.c.b16 %v595, %v594
        %v619 = vpack.c.b16 %v597, %v596
        %v620 = vpack.c.b16 %v599, %v598
        %v621 = vpack.c.b16 %v601, %v600
        %v622 = vpack.c.b16 %v603, %v602
        %v623 = vpack.c.b16 %v605, %v604
        %v624 = vpack.c.b16 %v607, %v606
        %v625 = vpack.c.b16 %v609, %v608
        %v626 = vpack.c.b16 %v611, %v610
        %v627 = vpack.c.b16 %v613, %v612
        %v628 = vpack.c.b16 %v615, %v614
        %v629 = vpack.c.b16 %v616, %v616
        %v643 = vsel %vm487, %v564, 0
        %v646 = vsel %vm330, %v629, 0
        %648 = vmatprep.subr.bf16.mxu0 0
        %649 = vmatpush1.bf16.msra.mxu0 %v617
        %650 = vmatprep.subr.bf16.mxu0 0
        %651 = vmatpush1.bf16.msra.mxu0 %v618
        %652 = vmatprep.subr.bf16.mxu0 0
        %653 = vmatpush1.bf16.msra.mxu0 %v619
        %654 = vmatprep.subr.bf16.mxu0 0
        %655 = vmatpush1.bf16.msra.mxu0 %v620
        %656 = vmatprep.subr.bf16.mxu0 0
        %657 = vmatpush1.bf16.msra.mxu0 %v621
        %658 = vmatprep.subr.bf16.mxu0 0
        %659 = vmatpush1.bf16.msra.mxu0 %v622
        %660 = vmatprep.subr.bf16.mxu0 0
        %661 = vmatpush1.bf16.msra.mxu0 %v623
        %662 = vmatprep.subr.bf16.mxu0 0
        %663 = vmatpush1.bf16.msra.mxu0 %v624
        %664 = vmatprep.subr.bf16.mxu0 0
        %665 = vmatpush1.bf16.msra.mxu0 %v625
        %666 = vmatprep.subr.bf16.mxu0 0
        %667 = vmatpush1.bf16.msra.mxu0 %v626
        %668 = vmatprep.subr.bf16.mxu0 0
        %669 = vmatpush1.bf16.msra.mxu0 %v627
        %670 = vmatprep.subr.bf16.mxu0 0
        %671 = vmatpush1.bf16.msra.mxu0 %v628
        %672 = vmatprep.subr.bf16.mxu0 0
        %673 = vmatpush1.bf16.msra.mxu0 %v646
        %674 = vmatprep.subr.bf16.mxu0 0
        %675 = vmatpush1.bf16.msra.mxu0 0
        %676 = vmatprep.subr.bf16.mxu0 0
        %677 = vmatpush1.bf16.msra.mxu0 0
        %678 = vmatprep.subr.bf16.mxu0 0
        %679 = vmatpush1.bf16.msra.mxu0 0
        %680 = vmatprep.mubr.bf16.mxu0 %v643
        %681 = vmatmul.mubr.bf16.gmra.mrb[0].mxu0 %v562
        %v682 = vpop.f32.mrb[0].mxu0
        %v683 = vadd.f32 0.0, %v682
        %v684 = vpop.f32.mrb[0].mxu0
        %v685 = vpop.f32.mrb[0].mxu0
        %v686 = vpop.f32.mrb[0].mxu0
        %687 = vdwg.mxu0
        %v688 = vadd.f32 %v534, %v683
        %s689 = scalar_lea.vmem %s3, 200
        %v690 = vld [vmem:[%s689] sm:$0xf]
        %v691 = vld [vmem:[%s689 + $0x4] sm:$0xf]
        %v692 = vld [vmem:[%s689 + $0x8] sm:$0xf]
        %v693 = vld [vmem:[%s689 + $0xc] sm:$0xf]
        %v694 = vld [vmem:[%s689 + $0x10] sm:$0xf]
        %v695 = vld [vmem:[%s689 + $0x14] sm:$0xf]
        %v696 = vld [vmem:[%s689 + $0x18] sm:$0xf]
        %v697 = vld [vmem:[%s689 + $0x1c] sm:$0xf]
        %v698 = vld [vmem:[%s689 + $0x20] sm:$0xf]
        %v699 = vld [vmem:[%s689 + $0x24] sm:$0xf]
        %v700 = vld [vmem:[%s689 + $0x28] sm:$0xf]
        %v701 = vld [vmem:[%s689 + $0x2c] sm:$0xf]
        %v702 = vld [vmem:[%s689 + $0x30] sm:$0xf]
        %v703 = vld [vmem:[%s689 + $0x34] sm:$0xf]
        %v704 = vld [vmem:[%s689 + $0x38] sm:$0xf]
        %v705 = vld [vmem:[%s689 + $0x3c] sm:$0xf]
        %v706 = vld [vmem:[%s689 + $0x40] sm:$0xf]
        %v707 = vld [vmem:[%s689 + $0x44] sm:$0xf]
        %v708 = vld [vmem:[%s689 + $0x48] sm:$0xf]
        %v709 = vld [vmem:[%s689 + $0x4c] sm:$0xf]
        %v710 = vld [vmem:[%s689 + $0x50] sm:$0xf]
        %v711 = vld [vmem:[%s689 + $0x54] sm:$0xf]
        %v712 = vld [vmem:[%s689 + $0x58] sm:$0xf]
        %v713 = vld [vmem:[%s689 + $0x5c] sm:$0xf]
        %v714 = vld [vmem:[%s689 + $0x60] sm:$0x3]
        %v717 = vrot.slane %v384, 1
        %v718 = vrot.slane %v385, 1
        %v745 = vunpack.c.l.b16 %v690
        %v746 = vunpack.c.l.b16 %v691
        %v747 = vunpack.c.l.b16 %v692
        %v748 = vunpack.c.l.b16 %v693
        %v749 = vunpack.c.l.b16 %v694
        %v750 = vunpack.c.l.b16 %v695
        %v751 = vunpack.c.l.b16 %v696
        %v752 = vunpack.c.l.b16 %v697
        %v753 = vunpack.c.l.b16 %v698
        %v754 = vunpack.c.l.b16 %v699
        %v755 = vunpack.c.l.b16 %v700
        %v756 = vunpack.c.l.b16 %v701
        %v757 = vunpack.c.l.b16 %v702
        %v758 = vunpack.c.l.b16 %v703
        %v759 = vunpack.c.l.b16 %v704
        %v760 = vunpack.c.l.b16 %v705
        %v761 = vunpack.c.l.b16 %v706
        %v762 = vunpack.c.l.b16 %v707
        %v763 = vunpack.c.l.b16 %v708
        %v764 = vunpack.c.l.b16 %v709
        %v765 = vunpack.c.l.b16 %v710
        %v766 = vunpack.c.l.b16 %v711
        %v767 = vunpack.c.l.b16 %v712
        %v768 = vunpack.c.l.b16 %v713
        %v769 = vunpack.c.l.b16 %v714
        %v770 = vpack.c.b16 %v746, %v745
        %v771 = vpack.c.b16 %v748, %v747
        %v772 = vpack.c.b16 %v750, %v749
        %v773 = vpack.c.b16 %v752, %v751
        %v774 = vpack.c.b16 %v754, %v753
        %v775 = vpack.c.b16 %v756, %v755
        %v776 = vpack.c.b16 %v758, %v757
        %v777 = vpack.c.b16 %v760, %v759
        %v778 = vpack.c.b16 %v762, %v761
        %v779 = vpack.c.b16 %v764, %v763
        %v780 = vpack.c.b16 %v766, %v765
        %v781 = vpack.c.b16 %v768, %v767
        %v782 = vpack.c.b16 %v769, %v769
        %v796 = vsel %vm487, %v718, 0
        %v799 = vsel %vm330, %v782, 0
        %801 = vmatprep.subr.bf16.mxu0 0
        %802 = vmatpush1.bf16.msra.mxu0 %v770
        %803 = vmatprep.subr.bf16.mxu0 0
        %804 = vmatpush1.bf16.msra.mxu0 %v771
        %805 = vmatprep.subr.bf16.mxu0 0
        %806 = vmatpush1.bf16.msra.mxu0 %v772
        %807 = vmatprep.subr.bf16.mxu0 0
        %808 = vmatpush1.bf16.msra.mxu0 %v773
        %809 = vmatprep.subr.bf16.mxu0 0
        %810 = vmatpush1.bf16.msra.mxu0 %v774
        %811 = vmatprep.subr.bf16.mxu0 0
        %812 = vmatpush1.bf16.msra.mxu0 %v775
        %813 = vmatprep.subr.bf16.mxu0 0
        %814 = vmatpush1.bf16.msra.mxu0 %v776
        %815 = vmatprep.subr.bf16.mxu0 0
        %816 = vmatpush1.bf16.msra.mxu0 %v777
        %817 = vmatprep.subr.bf16.mxu0 0
        %818 = vmatpush1.bf16.msra.mxu0 %v778
        %819 = vmatprep.subr.bf16.mxu0 0
        %820 = vmatpush1.bf16.msra.mxu0 %v779
        %821 = vmatprep.subr.bf16.mxu0 0
        %822 = vmatpush1.bf16.msra.mxu0 %v780
        %823 = vmatprep.subr.bf16.mxu0 0
        %824 = vmatpush1.bf16.msra.mxu0 %v781
        %825 = vmatprep.subr.bf16.mxu0 0
        %826 = vmatpush1.bf16.msra.mxu0 %v799
        %827 = vmatprep.subr.bf16.mxu0 0
        %828 = vmatpush1.bf16.msra.mxu0 0
        %829 = vmatprep.subr.bf16.mxu0 0
        %830 = vmatpush1.bf16.msra.mxu0 0
        %831 = vmatprep.subr.bf16.mxu0 0
        %832 = vmatpush1.bf16.msra.mxu0 0
        %833 = vmatprep.mubr.bf16.mxu0 %v796
        %834 = vmatmul.mubr.bf16.gmra.mrb[0].mxu0 %v717
        %v835 = vpop.f32.mrb[0].mxu0
        %v836 = vadd.f32 0.0, %v835
        %v837 = vpop.f32.mrb[0].mxu0
        %v838 = vpop.f32.mrb[0].mxu0
        %v839 = vpop.f32.mrb[0].mxu0
        %840 = vdwg.mxu0
        %v841 = vadd.f32 %v688, %v836
        %s842 = scalar_lea.vmem %s3, 300
        %v843 = vld [vmem:[%s842] sm:$0xf]
        %v844 = vld [vmem:[%s842 + $0x4] sm:$0xf]
        %v845 = vld [vmem:[%s842 + $0x8] sm:$0xf]
        %v846 = vld [vmem:[%s842 + $0xc] sm:$0xf]
        %v847 = vld [vmem:[%s842 + $0x10] sm:$0xf]
        %v848 = vld [vmem:[%s842 + $0x14] sm:$0xf]
        %v849 = vld [vmem:[%s842 + $0x18] sm:$0xf]
        %v850 = vld [vmem:[%s842 + $0x1c] sm:$0xf]
        %v851 = vld [vmem:[%s842 + $0x20] sm:$0xf]
        %v852 = vld [vmem:[%s842 + $0x24] sm:$0xf]
        %v853 = vld [vmem:[%s842 + $0x28] sm:$0xf]
        %v854 = vld [vmem:[%s842 + $0x2c] sm:$0xf]
        %v855 = vld [vmem:[%s842 + $0x30] sm:$0xf]
        %v856 = vld [vmem:[%s842 + $0x34] sm:$0xf]
        %v857 = vld [vmem:[%s842 + $0x38] sm:$0xf]
        %v858 = vld [vmem:[%s842 + $0x3c] sm:$0xf]
        %v859 = vld [vmem:[%s842 + $0x40] sm:$0xf]
        %v860 = vld [vmem:[%s842 + $0x44] sm:$0xf]
        %v861 = vld [vmem:[%s842 + $0x48] sm:$0xf]
        %v862 = vld [vmem:[%s842 + $0x4c] sm:$0xf]
        %v863 = vld [vmem:[%s842 + $0x50] sm:$0xf]
        %v864 = vld [vmem:[%s842 + $0x54] sm:$0xf]
        %v865 = vld [vmem:[%s842 + $0x58] sm:$0xf]
        %v866 = vld [vmem:[%s842 + $0x5c] sm:$0xf]
        %v867 = vld [vmem:[%s842 + $0x60] sm:$0x3]
        %v868 = vrot.slane %v562, 1
        %v869 = vrot.slane %v564, 1
        %v896 = vunpack.c.l.b16 %v843
        %v897 = vunpack.c.l.b16 %v844
        %v898 = vunpack.c.l.b16 %v845
        %v899 = vunpack.c.l.b16 %v846
        %v900 = vunpack.c.l.b16 %v847
        %v901 = vunpack.c.l.b16 %v848
        %v902 = vunpack.c.l.b16 %v849
        %v903 = vunpack.c.l.b16 %v850
        %v904 = vunpack.c.l.b16 %v851
        %v905 = vunpack.c.l.b16 %v852
        %v906 = vunpack.c.l.b16 %v853
        %v907 = vunpack.c.l.b16 %v854
        %v908 = vunpack.c.l.b16 %v855
        %v909 = vunpack.c.l.b16 %v856
        %v910 = vunpack.c.l.b16 %v857
        %v911 = vunpack.c.l.b16 %v858
        %v912 = vunpack.c.l.b16 %v859
        %v913 = vunpack.c.l.b16 %v860
        %v914 = vunpack.c.l.b16 %v861
        %v915 = vunpack.c.l.b16 %v862
        %v916 = vunpack.c.l.b16 %v863
        %v917 = vunpack.c.l.b16 %v864
        %v918 = vunpack.c.l.b16 %v865
        %v919 = vunpack.c.l.b16 %v866
        %v920 = vunpack.c.l.b16 %v867
        %v921 = vpack.c.b16 %v897, %v896
        %v922 = vpack.c.b16 %v899, %v898
        %v923 = vpack.c.b16 %v901, %v900
        %v924 = vpack.c.b16 %v903, %v902
        %v925 = vpack.c.b16 %v905, %v904
        %v926 = vpack.c.b16 %v907, %v906
        %v927 = vpack.c.b16 %v909, %v908
        %v928 = vpack.c.b16 %v911, %v910
        %v929 = vpack.c.b16 %v913, %v912
        %v930 = vpack.c.b16 %v915, %v914
        %v931 = vpack.c.b16 %v917, %v916
        %v932 = vpack.c.b16 %v919, %v918
        %v933 = vpack.c.b16 %v920, %v920
        %v947 = vsel %vm487, %v869, 0
        %v950 = vsel %vm330, %v933, 0
        %952 = vmatprep.subr.bf16.mxu0 0
        %953 = vmatpush1.bf16.msra.mxu0 %v921
        %954 = vmatprep.subr.bf16.mxu0 0
        %955 = vmatpush1.bf16.msra.mxu0 %v922
        %956 = vmatprep.subr.bf16.mxu0 0
        %957 = vmatpush1.bf16.msra.mxu0 %v923
        %958 = vmatprep.subr.bf16.mxu0 0
        %959 = vmatpush1.bf16.msra.mxu0 %v924
        %960 = vmatprep.subr.bf16.mxu0 0
        %961 = vmatpush1.bf16.msra.mxu0 %v925
        %962 = vmatprep.subr.bf16.mxu0 0
        %963 = vmatpush1.bf16.msra.mxu0 %v926
        %964 = vmatprep.subr.bf16.mxu0 0
        %965 = vmatpush1.bf16.msra.mxu0 %v927
        %966 = vmatprep.subr.bf16.mxu0 0
        %967 = vmatpush1.bf16.msra.mxu0 %v928
        %968 = vmatprep.subr.bf16.mxu0 0
        %969 = vmatpush1.bf16.msra.mxu0 %v929
        %970 = vmatprep.subr.bf16.mxu0 0
        %971 = vmatpush1.bf16.msra.mxu0 %v930
        %972 = vmatprep.subr.bf16.mxu0 0
        %973 = vmatpush1.bf16.msra.mxu0 %v931
        %974 = vmatprep.subr.bf16.mxu0 0
        %975 = vmatpush1.bf16.msra.mxu0 %v932
        %976 = vmatprep.subr.bf16.mxu0 0
        %977 = vmatpush1.bf16.msra.mxu0 %v950
        %978 = vmatprep.subr.bf16.mxu0 0
        %979 = vmatpush1.bf16.msra.mxu0 0
        %980 = vmatprep.subr.bf16.mxu0 0
        %981 = vmatpush1.bf16.msra.mxu0 0
        %982 = vmatprep.subr.bf16.mxu0 0
        %983 = vmatpush1.bf16.msra.mxu0 0
        %984 = vmatprep.mubr.bf16.mxu0 %v947
        %985 = vmatmul.mubr.bf16.gmra.mrb[0].mxu0 %v868
        %v986 = vpop.f32.mrb[0].mxu0
        %v987 = vadd.f32 0.0, %v986
        %v988 = vpop.f32.mrb[0].mxu0
        %v989 = vpop.f32.mrb[0].mxu0
        %v990 = vpop.f32.mrb[0].mxu0
        %991 = vdwg.mxu0
        %v992 = vadd.f32 %v841, %v987
        %s993 = scalar_lea.vmem %s3, 400
        %v994 = vld [vmem:[%s993] sm:$0xf]
        %v995 = vld [vmem:[%s993 + $0x4] sm:$0xf]
        %v996 = vld [vmem:[%s993 + $0x8] sm:$0xf]
        %v997 = vld [vmem:[%s993 + $0xc] sm:$0xf]
        %v998 = vld [vmem:[%s993 + $0x10] sm:$0xf]
        %v999 = vld [vmem:[%s993 + $0x14] sm:$0xf]
        %v1000 = vld [vmem:[%s993 + $0x18] sm:$0xf]
        %v1001 = vld [vmem:[%s993 + $0x1c] sm:$0xf]
        %v1002 = vld [vmem:[%s993 + $0x20] sm:$0xf]
        %v1003 = vld [vmem:[%s993 + $0x24] sm:$0xf]
        %v1004 = vld [vmem:[%s993 + $0x28] sm:$0xf]
        %v1005 = vld [vmem:[%s993 + $0x2c] sm:$0xf]
        %v1006 = vld [vmem:[%s993 + $0x30] sm:$0xf]
        %v1007 = vld [vmem:[%s993 + $0x34] sm:$0xf]
        %v1008 = vld [vmem:[%s993 + $0x38] sm:$0xf]
        %v1009 = vld [vmem:[%s993 + $0x3c] sm:$0xf]
        %v1010 = vld [vmem:[%s993 + $0x40] sm:$0xf]
        %v1011 = vld [vmem:[%s993 + $0x44] sm:$0xf]
        %v1012 = vld [vmem:[%s993 + $0x48] sm:$0xf]
        %v1013 = vld [vmem:[%s993 + $0x4c] sm:$0xf]
        %v1014 = vld [vmem:[%s993 + $0x50] sm:$0xf]
        %v1015 = vld [vmem:[%s993 + $0x54] sm:$0xf]
        %v1016 = vld [vmem:[%s993 + $0x58] sm:$0xf]
        %v1017 = vld [vmem:[%s993 + $0x5c] sm:$0xf]
        %v1018 = vld [vmem:[%s993 + $0x60] sm:$0x3]
        %v1019 = vrot.slane %v384, 2
        %v1020 = vrot.slane %v385, 2
        %v1047 = vunpack.c.l.b16 %v994
        %v1048 = vunpack.c.l.b16 %v995
        %v1049 = vunpack.c.l.b16 %v996
        %v1050 = vunpack.c.l.b16 %v997
        %v1051 = vunpack.c.l.b16 %v998
        %v1052 = vunpack.c.l.b16 %v999
        %v1053 = vunpack.c.l.b16 %v1000
        %v1054 = vunpack.c.l.b16 %v1001
        %v1055 = vunpack.c.l.b16 %v1002
        %v1056 = vunpack.c.l.b16 %v1003
        %v1057 = vunpack.c.l.b16 %v1004
        %v1058 = vunpack.c.l.b16 %v1005
        %v1059 = vunpack.c.l.b16 %v1006
        %v1060 = vunpack.c.l.b16 %v1007
        %v1061 = vunpack.c.l.b16 %v1008
        %v1062 = vunpack.c.l.b16 %v1009
        %v1063 = vunpack.c.l.b16 %v1010
        %v1064 = vunpack.c.l.b16 %v1011
        %v1065 = vunpack.c.l.b16 %v1012
        %v1066 = vunpack.c.l.b16 %v1013
        %v1067 = vunpack.c.l.b16 %v1014
        %v1068 = vunpack.c.l.b16 %v1015
        %v1069 = vunpack.c.l.b16 %v1016
        %v1070 = vunpack.c.l.b16 %v1017
        %v1071 = vunpack.c.l.b16 %v1018
        %v1072 = vpack.c.b16 %v1048, %v1047
        %v1073 = vpack.c.b16 %v1050, %v1049
        %v1074 = vpack.c.b16 %v1052, %v1051
        %v1075 = vpack.c.b16 %v1054, %v1053
        %v1076 = vpack.c.b16 %v1056, %v1055
        %v1077 = vpack.c.b16 %v1058, %v1057
        %v1078 = vpack.c.b16 %v1060, %v1059
        %v1079 = vpack.c.b16 %v1062, %v1061
        %v1080 = vpack.c.b16 %v1064, %v1063
        %v1081 = vpack.c.b16 %v1066, %v1065
        %v1082 = vpack.c.b16 %v1068, %v1067
        %v1083 = vpack.c.b16 %v1070, %v1069
        %v1084 = vpack.c.b16 %v1071, %v1071
        %v1098 = vsel %vm487, %v1020, 0
        %v1101 = vsel %vm330, %v1084, 0
        %1103 = vmatprep.subr.bf16.mxu0 0
        %1104 = vmatpush1.bf16.msra.mxu0 %v1072
        %1105 = vmatprep.subr.bf16.mxu0 0
        %1106 = vmatpush1.bf16.msra.mxu0 %v1073
        %1107 = vmatprep.subr.bf16.mxu0 0
        %1108 = vmatpush1.bf16.msra.mxu0 %v1074
        %1109 = vmatprep.subr.bf16.mxu0 0
        %1110 = vmatpush1.bf16.msra.mxu0 %v1075
        %1111 = vmatprep.subr.bf16.mxu0 0
        %1112 = vmatpush1.bf16.msra.mxu0 %v1076
        %1113 = vmatprep.subr.bf16.mxu0 0
        %1114 = vmatpush1.bf16.msra.mxu0 %v1077
        %1115 = vmatprep.subr.bf16.mxu0 0
        %1116 = vmatpush1.bf16.msra.mxu0 %v1078
        %1117 = vmatprep.subr.bf16.mxu0 0
        %1118 = vmatpush1.bf16.msra.mxu0 %v1079
        %1119 = vmatprep.subr.bf16.mxu0 0
        %1120 = vmatpush1.bf16.msra.mxu0 %v1080
        %1121 = vmatprep.subr.bf16.mxu0 0
        %1122 = vmatpush1.bf16.msra.mxu0 %v1081
        %1123 = vmatprep.subr.bf16.mxu0 0
        %1124 = vmatpush1.bf16.msra.mxu0 %v1082
        %1125 = vmatprep.subr.bf16.mxu0 0
        %1126 = vmatpush1.bf16.msra.mxu0 %v1083
        %1127 = vmatprep.subr.bf16.mxu0 0
        %1128 = vmatpush1.bf16.msra.mxu0 %v1101
        %1129 = vmatprep.subr.bf16.mxu0 0
        %1130 = vmatpush1.bf16.msra.mxu0 0
        %1131 = vmatprep.subr.bf16.mxu0 0
        %1132 = vmatpush1.bf16.msra.mxu0 0
        %1133 = vmatprep.subr.bf16.mxu0 0
        %1134 = vmatpush1.bf16.msra.mxu0 0
        %1135 = vmatprep.mubr.bf16.mxu0 %v1098
        %1136 = vmatmul.mubr.bf16.gmra.mrb[0].mxu0 %v1019
        %v1137 = vpop.f32.mrb[0].mxu0
        %v1138 = vadd.f32 0.0, %v1137
        %v1139 = vpop.f32.mrb[0].mxu0
        %v1140 = vpop.f32.mrb[0].mxu0
        %v1141 = vpop.f32.mrb[0].mxu0
        %1142 = vdwg.mxu0
        %v1143 = vadd.f32 %v992, %v1138
        %s1144 = scalar_lea.vmem %s3, 500
        %v1145 = vld [vmem:[%s1144] sm:$0xf]
        %v1146 = vld [vmem:[%s1144 + $0x4] sm:$0xf]
        %v1147 = vld [vmem:[%s1144 + $0x8] sm:$0xf]
        %v1148 = vld [vmem:[%s1144 + $0xc] sm:$0xf]
        %v1149 = vld [vmem:[%s1144 + $0x10] sm:$0xf]
        %v1150 = vld [vmem:[%s1144 + $0x14] sm:$0xf]
        %v1151 = vld [vmem:[%s1144 + $0x18] sm:$0xf]
        %v1152 = vld [vmem:[%s1144 + $0x1c] sm:$0xf]
        %v1153 = vld [vmem:[%s1144 + $0x20] sm:$0xf]
        %v1154 = vld [vmem:[%s1144 + $0x24] sm:$0xf]
        %v1155 = vld [vmem:[%s1144 + $0x28] sm:$0xf]
        %v1156 = vld [vmem:[%s1144 + $0x2c] sm:$0xf]
        %v1157 = vld [vmem:[%s1144 + $0x30] sm:$0xf]
        %v1158 = vld [vmem:[%s1144 + $0x34] sm:$0xf]
        %v1159 = vld [vmem:[%s1144 + $0x38] sm:$0xf]
        %v1160 = vld [vmem:[%s1144 + $0x3c] sm:$0xf]
        %v1161 = vld [vmem:[%s1144 + $0x40] sm:$0xf]
        %v1162 = vld [vmem:[%s1144 + $0x44] sm:$0xf]
        %v1163 = vld [vmem:[%s1144 + $0x48] sm:$0xf]
        %v1164 = vld [vmem:[%s1144 + $0x4c] sm:$0xf]
        %v1165 = vld [vmem:[%s1144 + $0x50] sm:$0xf]
        %v1166 = vld [vmem:[%s1144 + $0x54] sm:$0xf]
        %v1167 = vld [vmem:[%s1144 + $0x58] sm:$0xf]
        %v1168 = vld [vmem:[%s1144 + $0x5c] sm:$0xf]
        %v1169 = vld [vmem:[%s1144 + $0x60] sm:$0x3]
        %v1170 = vrot.slane %v562, 2
        %v1171 = vrot.slane %v564, 2
        %v1198 = vunpack.c.l.b16 %v1145
        %v1199 = vunpack.c.l.b16 %v1146
        %v1200 = vunpack.c.l.b16 %v1147
        %v1201 = vunpack.c.l.b16 %v1148
        %v1202 = vunpack.c.l.b16 %v1149
        %v1203 = vunpack.c.l.b16 %v1150
        %v1204 = vunpack.c.l.b16 %v1151
        %v1205 = vunpack.c.l.b16 %v1152
        %v1206 = vunpack.c.l.b16 %v1153
        %v1207 = vunpack.c.l.b16 %v1154
        %v1208 = vunpack.c.l.b16 %v1155
        %v1209 = vunpack.c.l.b16 %v1156
        %v1210 = vunpack.c.l.b16 %v1157
        %v1211 = vunpack.c.l.b16 %v1158
        %v1212 = vunpack.c.l.b16 %v1159
        %v1213 = vunpack.c.l.b16 %v1160
        %v1214 = vunpack.c.l.b16 %v1161
        %v1215 = vunpack.c.l.b16 %v1162
        %v1216 = vunpack.c.l.b16 %v1163
        %v1217 = vunpack.c.l.b16 %v1164
        %v1218 = vunpack.c.l.b16 %v1165
        %v1219 = vunpack.c.l.b16 %v1166
        %v1220 = vunpack.c.l.b16 %v1167
        %v1221 = vunpack.c.l.b16 %v1168
        %v1222 = vunpack.c.l.b16 %v1169
        %v1223 = vpack.c.b16 %v1199, %v1198
        %v1224 = vpack.c.b16 %v1201, %v1200
        %v1225 = vpack.c.b16 %v1203, %v1202
        %v1226 = vpack.c.b16 %v1205, %v1204
        %v1227 = vpack.c.b16 %v1207, %v1206
        %v1228 = vpack.c.b16 %v1209, %v1208
        %v1229 = vpack.c.b16 %v1211, %v1210
        %v1230 = vpack.c.b16 %v1213, %v1212
        %v1231 = vpack.c.b16 %v1215, %v1214
        %v1232 = vpack.c.b16 %v1217, %v1216
        %v1233 = vpack.c.b16 %v1219, %v1218
        %v1234 = vpack.c.b16 %v1221, %v1220
        %v1235 = vpack.c.b16 %v1222, %v1222
        %v1249 = vsel %vm487, %v1171, 0
        %v1252 = vsel %vm330, %v1235, 0
        %1254 = vmatprep.subr.bf16.mxu0 0
        %1255 = vmatpush1.bf16.msra.mxu0 %v1223
        %1256 = vmatprep.subr.bf16.mxu0 0
        %1257 = vmatpush1.bf16.msra.mxu0 %v1224
        %1258 = vmatprep.subr.bf16.mxu0 0
        %1259 = vmatpush1.bf16.msra.mxu0 %v1225
        %1260 = vmatprep.subr.bf16.mxu0 0
        %1261 = vmatpush1.bf16.msra.mxu0 %v1226
        %1262 = vmatprep.subr.bf16.mxu0 0
        %1263 = vmatpush1.bf16.msra.mxu0 %v1227
        %1264 = vmatprep.subr.bf16.mxu0 0
        %1265 = vmatpush1.bf16.msra.mxu0 %v1228
        %1266 = vmatprep.subr.bf16.mxu0 0
        %1267 = vmatpush1.bf16.msra.mxu0 %v1229
        %1268 = vmatprep.subr.bf16.mxu0 0
        %1269 = vmatpush1.bf16.msra.mxu0 %v1230
        %1270 = vmatprep.subr.bf16.mxu0 0
        %1271 = vmatpush1.bf16.msra.mxu0 %v1231
        %1272 = vmatprep.subr.bf16.mxu0 0
        %1273 = vmatpush1.bf16.msra.mxu0 %v1232
        %1274 = vmatprep.subr.bf16.mxu0 0
        %1275 = vmatpush1.bf16.msra.mxu0 %v1233
        %1276 = vmatprep.subr.bf16.mxu0 0
        %1277 = vmatpush1.bf16.msra.mxu0 %v1234
        %1278 = vmatprep.subr.bf16.mxu0 0
        %1279 = vmatpush1.bf16.msra.mxu0 %v1252
        %1280 = vmatprep.subr.bf16.mxu0 0
        %1281 = vmatpush1.bf16.msra.mxu0 0
        %1282 = vmatprep.subr.bf16.mxu0 0
        %1283 = vmatpush1.bf16.msra.mxu0 0
        %1284 = vmatprep.subr.bf16.mxu0 0
        %1285 = vmatpush1.bf16.msra.mxu0 0
        %1286 = vmatprep.mubr.bf16.mxu0 %v1249
        %1287 = vmatmul.mubr.bf16.gmra.mrb[0].mxu0 %v1170
        %v1288 = vpop.f32.mrb[0].mxu0
        %v1289 = vadd.f32 0.0, %v1288
        %v1290 = vpop.f32.mrb[0].mxu0
        %v1291 = vpop.f32.mrb[0].mxu0
        %v1292 = vpop.f32.mrb[0].mxu0
        %1293 = vdwg.mxu0
        %v1294 = vadd.f32 %v1143, %v1289
        %s1295 = scalar_lea.vmem %s3, 600
        %v1296 = vld [vmem:[%s1295] sm:$0xf]
        %v1297 = vld [vmem:[%s1295 + $0x4] sm:$0xf]
        %v1298 = vld [vmem:[%s1295 + $0x8] sm:$0xf]
        %v1299 = vld [vmem:[%s1295 + $0xc] sm:$0xf]
        %v1300 = vld [vmem:[%s1295 + $0x10] sm:$0xf]
        %v1301 = vld [vmem:[%s1295 + $0x14] sm:$0xf]
        %v1302 = vld [vmem:[%s1295 + $0x18] sm:$0xf]
        %v1303 = vld [vmem:[%s1295 + $0x1c] sm:$0xf]
        %v1304 = vld [vmem:[%s1295 + $0x20] sm:$0xf]
        %v1305 = vld [vmem:[%s1295 + $0x24] sm:$0xf]
        %v1306 = vld [vmem:[%s1295 + $0x28] sm:$0xf]
        %v1307 = vld [vmem:[%s1295 + $0x2c] sm:$0xf]
        %v1308 = vld [vmem:[%s1295 + $0x30] sm:$0xf]
        %v1309 = vld [vmem:[%s1295 + $0x34] sm:$0xf]
        %v1310 = vld [vmem:[%s1295 + $0x38] sm:$0xf]
        %v1311 = vld [vmem:[%s1295 + $0x3c] sm:$0xf]
        %v1312 = vld [vmem:[%s1295 + $0x40] sm:$0xf]
        %v1313 = vld [vmem:[%s1295 + $0x44] sm:$0xf]
        %v1314 = vld [vmem:[%s1295 + $0x48] sm:$0xf]
        %v1315 = vld [vmem:[%s1295 + $0x4c] sm:$0xf]
        %v1316 = vld [vmem:[%s1295 + $0x50] sm:$0xf]
        %v1317 = vld [vmem:[%s1295 + $0x54] sm:$0xf]
        %v1318 = vld [vmem:[%s1295 + $0x58] sm:$0xf]
        %v1319 = vld [vmem:[%s1295 + $0x5c] sm:$0xf]
        %v1320 = vld [vmem:[%s1295 + $0x60] sm:$0x3]
        %v1321 = vrot.slane %v384, 3
        %v1322 = vrot.slane %v385, 3
        %v1349 = vunpack.c.l.b16 %v1296
        %v1350 = vunpack.c.l.b16 %v1297
        %v1351 = vunpack.c.l.b16 %v1298
        %v1352 = vunpack.c.l.b16 %v1299
        %v1353 = vunpack.c.l.b16 %v1300
        %v1354 = vunpack.c.l.b16 %v1301
        %v1355 = vunpack.c.l.b16 %v1302
        %v1356 = vunpack.c.l.b16 %v1303
        %v1357 = vunpack.c.l.b16 %v1304
        %v1358 = vunpack.c.l.b16 %v1305
        %v1359 = vunpack.c.l.b16 %v1306
        %v1360 = vunpack.c.l.b16 %v1307
        %v1361 = vunpack.c.l.b16 %v1308
        %v1362 = vunpack.c.l.b16 %v1309
        %v1363 = vunpack.c.l.b16 %v1310
        %v1364 = vunpack.c.l.b16 %v1311
        %v1365 = vunpack.c.l.b16 %v1312
        %v1366 = vunpack.c.l.b16 %v1313
        %v1367 = vunpack.c.l.b16 %v1314
        %v1368 = vunpack.c.l.b16 %v1315
        %v1369 = vunpack.c.l.b16 %v1316
        %v1370 = vunpack.c.l.b16 %v1317
        %v1371 = vunpack.c.l.b16 %v1318
        %v1372 = vunpack.c.l.b16 %v1319
        %v1373 = vunpack.c.l.b16 %v1320
        %v1374 = vpack.c.b16 %v1350, %v1349
        %v1375 = vpack.c.b16 %v1352, %v1351
        %v1376 = vpack.c.b16 %v1354, %v1353
        %v1377 = vpack.c.b16 %v1356, %v1355
        %v1378 = vpack.c.b16 %v1358, %v1357
        %v1379 = vpack.c.b16 %v1360, %v1359
        %v1380 = vpack.c.b16 %v1362, %v1361
        %v1381 = vpack.c.b16 %v1364, %v1363
        %v1382 = vpack.c.b16 %v1366, %v1365
        %v1383 = vpack.c.b16 %v1368, %v1367
        %v1384 = vpack.c.b16 %v1370, %v1369
        %v1385 = vpack.c.b16 %v1372, %v1371
        %v1386 = vpack.c.b16 %v1373, %v1373
        %v1400 = vsel %vm487, %v1322, 0
        %v1403 = vsel %vm330, %v1386, 0
        %1405 = vmatprep.subr.bf16.mxu0 0
        %1406 = vmatpush1.bf16.msra.mxu0 %v1374
        %1407 = vmatprep.subr.bf16.mxu0 0
        %1408 = vmatpush1.bf16.msra.mxu0 %v1375
        %1409 = vmatprep.subr.bf16.mxu0 0
        %1410 = vmatpush1.bf16.msra.mxu0 %v1376
        %1411 = vmatprep.subr.bf16.mxu0 0
        %1412 = vmatpush1.bf16.msra.mxu0 %v1377
        %1413 = vmatprep.subr.bf16.mxu0 0
        %1414 = vmatpush1.bf16.msra.mxu0 %v1378
        %1415 = vmatprep.subr.bf16.mxu0 0
        %1416 = vmatpush1.bf16.msra.mxu0 %v1379
        %1417 = vmatprep.subr.bf16.mxu0 0
        %1418 = vmatpush1.bf16.msra.mxu0 %v1380
        %1419 = vmatprep.subr.bf16.mxu0 0
        %1420 = vmatpush1.bf16.msra.mxu0 %v1381
        %1421 = vmatprep.subr.bf16.mxu0 0
        %1422 = vmatpush1.bf16.msra.mxu0 %v1382
        %1423 = vmatprep.subr.bf16.mxu0 0
        %1424 = vmatpush1.bf16.msra.mxu0 %v1383
        %1425 = vmatprep.subr.bf16.mxu0 0
        %1426 = vmatpush1.bf16.msra.mxu0 %v1384
        %1427 = vmatprep.subr.bf16.mxu0 0
        %1428 = vmatpush1.bf16.msra.mxu0 %v1385
        %1429 = vmatprep.subr.bf16.mxu0 0
        %1430 = vmatpush1.bf16.msra.mxu0 %v1403
        %1431 = vmatprep.subr.bf16.mxu0 0
        %1432 = vmatpush1.bf16.msra.mxu0 0
        %1433 = vmatprep.subr.bf16.mxu0 0
        %1434 = vmatpush1.bf16.msra.mxu0 0
        %1435 = vmatprep.subr.bf16.mxu0 0
        %1436 = vmatpush1.bf16.msra.mxu0 0
        %1437 = vmatprep.mubr.bf16.mxu0 %v1400
        %1438 = vmatmul.mubr.bf16.gmra.mrb[0].mxu0 %v1321
        %v1439 = vpop.f32.mrb[0].mxu0
        %v1440 = vadd.f32 0.0, %v1439
        %v1441 = vpop.f32.mrb[0].mxu0
        %v1442 = vpop.f32.mrb[0].mxu0
        %v1443 = vpop.f32.mrb[0].mxu0
        %1444 = vdwg.mxu0
        %v1445 = vadd.f32 %v1294, %v1440
        %s1446 = scalar_lea.vmem %s3, 700
        %v1447 = vld [vmem:[%s1446] sm:$0xf]
        %v1448 = vld [vmem:[%s1446 + $0x4] sm:$0xf]
        %v1449 = vld [vmem:[%s1446 + $0x8] sm:$0xf]
        %v1450 = vld [vmem:[%s1446 + $0xc] sm:$0xf]
        %v1451 = vld [vmem:[%s1446 + $0x10] sm:$0xf]
        %v1452 = vld [vmem:[%s1446 + $0x14] sm:$0xf]
        %v1453 = vld [vmem:[%s1446 + $0x18] sm:$0xf]
        %v1454 = vld [vmem:[%s1446 + $0x1c] sm:$0xf]
        %v1455 = vld [vmem:[%s1446 + $0x20] sm:$0xf]
        %v1456 = vld [vmem:[%s1446 + $0x24] sm:$0xf]
        %v1457 = vld [vmem:[%s1446 + $0x28] sm:$0xf]
        %v1458 = vld [vmem:[%s1446 + $0x2c] sm:$0xf]
        %v1459 = vld [vmem:[%s1446 + $0x30] sm:$0xf]
        %v1460 = vld [vmem:[%s1446 + $0x34] sm:$0xf]
        %v1461 = vld [vmem:[%s1446 + $0x38] sm:$0xf]
        %v1462 = vld [vmem:[%s1446 + $0x3c] sm:$0xf]
        %v1463 = vld [vmem:[%s1446 + $0x40] sm:$0xf]
        %v1464 = vld [vmem:[%s1446 + $0x44] sm:$0xf]
        %v1465 = vld [vmem:[%s1446 + $0x48] sm:$0xf]
        %v1466 = vld [vmem:[%s1446 + $0x4c] sm:$0xf]
        %v1467 = vld [vmem:[%s1446 + $0x50] sm:$0xf]
        %v1468 = vld [vmem:[%s1446 + $0x54] sm:$0xf]
        %v1469 = vld [vmem:[%s1446 + $0x58] sm:$0xf]
        %v1470 = vld [vmem:[%s1446 + $0x5c] sm:$0xf]
        %v1471 = vld [vmem:[%s1446 + $0x60] sm:$0x3]
        %v1472 = vrot.slane %v562, 3
        %v1473 = vrot.slane %v564, 3
        %v1500 = vunpack.c.l.b16 %v1447
        %v1501 = vunpack.c.l.b16 %v1448
        %v1502 = vunpack.c.l.b16 %v1449
        %v1503 = vunpack.c.l.b16 %v1450
        %v1504 = vunpack.c.l.b16 %v1451
        %v1505 = vunpack.c.l.b16 %v1452
        %v1506 = vunpack.c.l.b16 %v1453
        %v1507 = vunpack.c.l.b16 %v1454
        %v1508 = vunpack.c.l.b16 %v1455
        %v1509 = vunpack.c.l.b16 %v1456
        %v1510 = vunpack.c.l.b16 %v1457
        %v1511 = vunpack.c.l.b16 %v1458
        %v1512 = vunpack.c.l.b16 %v1459
        %v1513 = vunpack.c.l.b16 %v1460
        %v1514 = vunpack.c.l.b16 %v1461
        %v1515 = vunpack.c.l.b16 %v1462
        %v1516 = vunpack.c.l.b16 %v1463
        %v1517 = vunpack.c.l.b16 %v1464
        %v1518 = vunpack.c.l.b16 %v1465
        %v1519 = vunpack.c.l.b16 %v1466
        %v1520 = vunpack.c.l.b16 %v1467
        %v1521 = vunpack.c.l.b16 %v1468
        %v1522 = vunpack.c.l.b16 %v1469
        %v1523 = vunpack.c.l.b16 %v1470
        %v1524 = vunpack.c.l.b16 %v1471
        %v1525 = vpack.c.b16 %v1501, %v1500
        %v1526 = vpack.c.b16 %v1503, %v1502
        %v1527 = vpack.c.b16 %v1505, %v1504
        %v1528 = vpack.c.b16 %v1507, %v1506
        %v1529 = vpack.c.b16 %v1509, %v1508
        %v1530 = vpack.c.b16 %v1511, %v1510
        %v1531 = vpack.c.b16 %v1513, %v1512
        %v1532 = vpack.c.b16 %v1515, %v1514
        %v1533 = vpack.c.b16 %v1517, %v1516
        %v1534 = vpack.c.b16 %v1519, %v1518
        %v1535 = vpack.c.b16 %v1521, %v1520
        %v1536 = vpack.c.b16 %v1523, %v1522
        %v1537 = vpack.c.b16 %v1524, %v1524
        %v1551 = vsel %vm487, %v1473, 0
        %v1554 = vsel %vm330, %v1537, 0
        %1556 = vmatprep.subr.bf16.mxu0 0
        %1557 = vmatpush1.bf16.msra.mxu0 %v1525
        %1558 = vmatprep.subr.bf16.mxu0 0
        %1559 = vmatpush1.bf16.msra.mxu0 %v1526
        %1560 = vmatprep.subr.bf16.mxu0 0
        %1561 = vmatpush1.bf16.msra.mxu0 %v1527
        %1562 = vmatprep.subr.bf16.mxu0 0
        %1563 = vmatpush1.bf16.msra.mxu0 %v1528
        %1564 = vmatprep.subr.bf16.mxu0 0
        %1565 = vmatpush1.bf16.msra.mxu0 %v1529
        %1566 = vmatprep.subr.bf16.mxu0 0
        %1567 = vmatpush1.bf16.msra.mxu0 %v1530
        %1568 = vmatprep.subr.bf16.mxu0 0
        %1569 = vmatpush1.bf16.msra.mxu0 %v1531
        %1570 = vmatprep.subr.bf16.mxu0 0
        %1571 = vmatpush1.bf16.msra.mxu0 %v1532
        %1572 = vmatprep.subr.bf16.mxu0 0
        %1573 = vmatpush1.bf16.msra.mxu0 %v1533
        %1574 = vmatprep.subr.bf16.mxu0 0
        %1575 = vmatpush1.bf16.msra.mxu0 %v1534
        %1576 = vmatprep.subr.bf16.mxu0 0
        %1577 = vmatpush1.bf16.msra.mxu0 %v1535
        %1578 = vmatprep.subr.bf16.mxu0 0
        %1579 = vmatpush1.bf16.msra.mxu0 %v1536
        %1580 = vmatprep.subr.bf16.mxu0 0
        %1581 = vmatpush1.bf16.msra.mxu0 %v1554
        %1582 = vmatprep.subr.bf16.mxu0 0
        %1583 = vmatpush1.bf16.msra.mxu0 0
        %1584 = vmatprep.subr.bf16.mxu0 0
        %1585 = vmatpush1.bf16.msra.mxu0 0
        %1586 = vmatprep.subr.bf16.mxu0 0
        %1587 = vmatpush1.bf16.msra.mxu0 0
        %1588 = vmatprep.mubr.bf16.mxu0 %v1551
        %1589 = vmatmul.mubr.bf16.gmra.mrb[0].mxu0 %v1472
        %v1590 = vpop.f32.mrb[0].mxu0
        %v1591 = vadd.f32 0.0, %v1590
        %v1592 = vpop.f32.mrb[0].mxu0
        %v1593 = vpop.f32.mrb[0].mxu0
        %v1594 = vpop.f32.mrb[0].mxu0
        %1595 = vdwg.mxu0
        %v1596 = vadd.f32 %v1445, %v1591
        %s1597 = scalar_lea.vmem %s3, 800
        %v1598 = vld [vmem:[%s1597] sm:$0xf]
        %v1599 = vld [vmem:[%s1597 + $0x4] sm:$0xf]
        %v1600 = vld [vmem:[%s1597 + $0x8] sm:$0xf]
        %v1601 = vld [vmem:[%s1597 + $0xc] sm:$0xf]
        %v1602 = vld [vmem:[%s1597 + $0x10] sm:$0xf]
        %v1603 = vld [vmem:[%s1597 + $0x14] sm:$0xf]
        %v1604 = vld [vmem:[%s1597 + $0x18] sm:$0xf]
        %v1605 = vld [vmem:[%s1597 + $0x1c] sm:$0xf]
        %v1606 = vld [vmem:[%s1597 + $0x20] sm:$0xf]
        %v1607 = vld [vmem:[%s1597 + $0x24] sm:$0xf]
        %v1608 = vld [vmem:[%s1597 + $0x28] sm:$0xf]
        %v1609 = vld [vmem:[%s1597 + $0x2c] sm:$0xf]
        %v1610 = vld [vmem:[%s1597 + $0x30] sm:$0xf]
        %v1611 = vld [vmem:[%s1597 + $0x34] sm:$0xf]
        %v1612 = vld [vmem:[%s1597 + $0x38] sm:$0xf]
        %v1613 = vld [vmem:[%s1597 + $0x3c] sm:$0xf]
        %v1614 = vld [vmem:[%s1597 + $0x40] sm:$0xf]
        %v1615 = vld [vmem:[%s1597 + $0x44] sm:$0xf]
        %v1616 = vld [vmem:[%s1597 + $0x48] sm:$0xf]
        %v1617 = vld [vmem:[%s1597 + $0x4c] sm:$0xf]
        %v1618 = vld [vmem:[%s1597 + $0x50] sm:$0xf]
        %v1619 = vld [vmem:[%s1597 + $0x54] sm:$0xf]
        %v1620 = vld [vmem:[%s1597 + $0x58] sm:$0xf]
        %v1621 = vld [vmem:[%s1597 + $0x5c] sm:$0xf]
        %v1622 = vld [vmem:[%s1597 + $0x60] sm:$0x3]
        %v1623 = vrot.slane %v384, 4
        %v1624 = vrot.slane %v385, 4
        %v1651 = vunpack.c.l.b16 %v1598
        %v1652 = vunpack.c.l.b16 %v1599
        %v1653 = vunpack.c.l.b16 %v1600
        %v1654 = vunpack.c.l.b16 %v1601
        %v1655 = vunpack.c.l.b16 %v1602
        %v1656 = vunpack.c.l.b16 %v1603
        %v1657 = vunpack.c.l.b16 %v1604
        %v1658 = vunpack.c.l.b16 %v1605
        %v1659 = vunpack.c.l.b16 %v1606
        %v1660 = vunpack.c.l.b16 %v1607
        %v1661 = vunpack.c.l.b16 %v1608
        %v1662 = vunpack.c.l.b16 %v1609
        %v1663 = vunpack.c.l.b16 %v1610
        %v1664 = vunpack.c.l.b16 %v1611
        %v1665 = vunpack.c.l.b16 %v1612
        %v1666 = vunpack.c.l.b16 %v1613
        %v1667 = vunpack.c.l.b16 %v1614
        %v1668 = vunpack.c.l.b16 %v1615
        %v1669 = vunpack.c.l.b16 %v1616
        %v1670 = vunpack.c.l.b16 %v1617
        %v1671 = vunpack.c.l.b16 %v1618
        %v1672 = vunpack.c.l.b16 %v1619
        %v1673 = vunpack.c.l.b16 %v1620
        %v1674 = vunpack.c.l.b16 %v1621
        %v1675 = vunpack.c.l.b16 %v1622
        %v1676 = vpack.c.b16 %v1652, %v1651
        %v1677 = vpack.c.b16 %v1654, %v1653
        %v1678 = vpack.c.b16 %v1656, %v1655
        %v1679 = vpack.c.b16 %v1658, %v1657
        %v1680 = vpack.c.b16 %v1660, %v1659
        %v1681 = vpack.c.b16 %v1662, %v1661
        %v1682 = vpack.c.b16 %v1664, %v1663
        %v1683 = vpack.c.b16 %v1666, %v1665
        %v1684 = vpack.c.b16 %v1668, %v1667
        %v1685 = vpack.c.b16 %v1670, %v1669
        %v1686 = vpack.c.b16 %v1672, %v1671
        %v1687 = vpack.c.b16 %v1674, %v1673
        %v1688 = vpack.c.b16 %v1675, %v1675
        %v1702 = vsel %vm487, %v1624, 0
        %v1705 = vsel %vm330, %v1688, 0
        %1707 = vmatprep.subr.bf16.mxu0 0
        %1708 = vmatpush1.bf16.msra.mxu0 %v1676
        %1709 = vmatprep.subr.bf16.mxu0 0
        %1710 = vmatpush1.bf16.msra.mxu0 %v1677
        %1711 = vmatprep.subr.bf16.mxu0 0
        %1712 = vmatpush1.bf16.msra.mxu0 %v1678
        %1713 = vmatprep.subr.bf16.mxu0 0
        %1714 = vmatpush1.bf16.msra.mxu0 %v1679
        %1715 = vmatprep.subr.bf16.mxu0 0
        %1716 = vmatpush1.bf16.msra.mxu0 %v1680
        %1717 = vmatprep.subr.bf16.mxu0 0
        %1718 = vmatpush1.bf16.msra.mxu0 %v1681
        %1719 = vmatprep.subr.bf16.mxu0 0
        %1720 = vmatpush1.bf16.msra.mxu0 %v1682
        %1721 = vmatprep.subr.bf16.mxu0 0
        %1722 = vmatpush1.bf16.msra.mxu0 %v1683
        %1723 = vmatprep.subr.bf16.mxu0 0
        %1724 = vmatpush1.bf16.msra.mxu0 %v1684
        %1725 = vmatprep.subr.bf16.mxu0 0
        %1726 = vmatpush1.bf16.msra.mxu0 %v1685
        %1727 = vmatprep.subr.bf16.mxu0 0
        %1728 = vmatpush1.bf16.msra.mxu0 %v1686
        %1729 = vmatprep.subr.bf16.mxu0 0
        %1730 = vmatpush1.bf16.msra.mxu0 %v1687
        %1731 = vmatprep.subr.bf16.mxu0 0
        %1732 = vmatpush1.bf16.msra.mxu0 %v1705
        %1733 = vmatprep.subr.bf16.mxu0 0
        %1734 = vmatpush1.bf16.msra.mxu0 0
        %1735 = vmatprep.subr.bf16.mxu0 0
        %1736 = vmatpush1.bf16.msra.mxu0 0
        %1737 = vmatprep.subr.bf16.mxu0 0
        %1738 = vmatpush1.bf16.msra.mxu0 0
        %1739 = vmatprep.mubr.bf16.mxu0 %v1702
        %1740 = vmatmul.mubr.bf16.gmra.mrb[0].mxu0 %v1623
        %v1741 = vpop.f32.mrb[0].mxu0
        %v1742 = vadd.f32 0.0, %v1741
        %v1743 = vpop.f32.mrb[0].mxu0
        %v1744 = vpop.f32.mrb[0].mxu0
        %v1745 = vpop.f32.mrb[0].mxu0
        %1746 = vdwg.mxu0
        %v1747 = vadd.f32 %v1596, %v1742
        %s1748 = scalar_lea.vmem %s3, 900
        %v1749 = vld [vmem:[%s1748] sm:$0xf]
        %v1750 = vld [vmem:[%s1748 + $0x4] sm:$0xf]
        %v1751 = vld [vmem:[%s1748 + $0x8] sm:$0xf]
        %v1752 = vld [vmem:[%s1748 + $0xc] sm:$0xf]
        %v1753 = vld [vmem:[%s1748 + $0x10] sm:$0xf]
        %v1754 = vld [vmem:[%s1748 + $0x14] sm:$0xf]
        %v1755 = vld [vmem:[%s1748 + $0x18] sm:$0xf]
        %v1756 = vld [vmem:[%s1748 + $0x1c] sm:$0xf]
        %v1757 = vld [vmem:[%s1748 + $0x20] sm:$0xf]
        %v1758 = vld [vmem:[%s1748 + $0x24] sm:$0xf]
        %v1759 = vld [vmem:[%s1748 + $0x28] sm:$0xf]
        %v1760 = vld [vmem:[%s1748 + $0x2c] sm:$0xf]
        %v1761 = vld [vmem:[%s1748 + $0x30] sm:$0xf]
        %v1762 = vld [vmem:[%s1748 + $0x34] sm:$0xf]
        %v1763 = vld [vmem:[%s1748 + $0x38] sm:$0xf]
        %v1764 = vld [vmem:[%s1748 + $0x3c] sm:$0xf]
        %v1765 = vld [vmem:[%s1748 + $0x40] sm:$0xf]
        %v1766 = vld [vmem:[%s1748 + $0x44] sm:$0xf]
        %v1767 = vld [vmem:[%s1748 + $0x48] sm:$0xf]
        %v1768 = vld [vmem:[%s1748 + $0x4c] sm:$0xf]
        %v1769 = vld [vmem:[%s1748 + $0x50] sm:$0xf]
        %v1770 = vld [vmem:[%s1748 + $0x54] sm:$0xf]
        %v1771 = vld [vmem:[%s1748 + $0x58] sm:$0xf]
        %v1772 = vld [vmem:[%s1748 + $0x5c] sm:$0xf]
        %v1773 = vld [vmem:[%s1748 + $0x60] sm:$0x3]
        %v1774 = vrot.slane %v562, 4
        %v1775 = vrot.slane %v564, 4
        %v1802 = vunpack.c.l.b16 %v1749
        %v1803 = vunpack.c.l.b16 %v1750
        %v1804 = vunpack.c.l.b16 %v1751
        %v1805 = vunpack.c.l.b16 %v1752
        %v1806 = vunpack.c.l.b16 %v1753
        %v1807 = vunpack.c.l.b16 %v1754
        %v1808 = vunpack.c.l.b16 %v1755
        %v1809 = vunpack.c.l.b16 %v1756
        %v1810 = vunpack.c.l.b16 %v1757
        %v1811 = vunpack.c.l.b16 %v1758
        %v1812 = vunpack.c.l.b16 %v1759
        %v1813 = vunpack.c.l.b16 %v1760
        %v1814 = vunpack.c.l.b16 %v1761
        %v1815 = vunpack.c.l.b16 %v1762
        %v1816 = vunpack.c.l.b16 %v1763
        %v1817 = vunpack.c.l.b16 %v1764
        %v1818 = vunpack.c.l.b16 %v1765
        %v1819 = vunpack.c.l.b16 %v1766
        %v1820 = vunpack.c.l.b16 %v1767
        %v1821 = vunpack.c.l.b16 %v1768
        %v1822 = vunpack.c.l.b16 %v1769
        %v1823 = vunpack.c.l.b16 %v1770
        %v1824 = vunpack.c.l.b16 %v1771
        %v1825 = vunpack.c.l.b16 %v1772
        %v1826 = vunpack.c.l.b16 %v1773
        %v1827 = vpack.c.b16 %v1803, %v1802
        %v1828 = vpack.c.b16 %v1805, %v1804
        %v1829 = vpack.c.b16 %v1807, %v1806
        %v1830 = vpack.c.b16 %v1809, %v1808
        %v1831 = vpack.c.b16 %v1811, %v1810
        %v1832 = vpack.c.b16 %v1813, %v1812
        %v1833 = vpack.c.b16 %v1815, %v1814
        %v1834 = vpack.c.b16 %v1817, %v1816
        %v1835 = vpack.c.b16 %v1819, %v1818
        %v1836 = vpack.c.b16 %v1821, %v1820
        %v1837 = vpack.c.b16 %v1823, %v1822
        %v1838 = vpack.c.b16 %v1825, %v1824
        %v1839 = vpack.c.b16 %v1826, %v1826
        %v1853 = vsel %vm487, %v1775, 0
        %v1856 = vsel %vm330, %v1839, 0
        %1858 = vmatprep.subr.bf16.mxu0 0
        %1859 = vmatpush1.bf16.msra.mxu0 %v1827
        %1860 = vmatprep.subr.bf16.mxu0 0
        %1861 = vmatpush1.bf16.msra.mxu0 %v1828
        %1862 = vmatprep.subr.bf16.mxu0 0
        %1863 = vmatpush1.bf16.msra.mxu0 %v1829
        %1864 = vmatprep.subr.bf16.mxu0 0
        %1865 = vmatpush1.bf16.msra.mxu0 %v1830
        %1866 = vmatprep.subr.bf16.mxu0 0
        %1867 = vmatpush1.bf16.msra.mxu0 %v1831
        %1868 = vmatprep.subr.bf16.mxu0 0
        %1869 = vmatpush1.bf16.msra.mxu0 %v1832
        %1870 = vmatprep.subr.bf16.mxu0 0
        %1871 = vmatpush1.bf16.msra.mxu0 %v1833
        %1872 = vmatprep.subr.bf16.mxu0 0
        %1873 = vmatpush1.bf16.msra.mxu0 %v1834
        %1874 = vmatprep.subr.bf16.mxu0 0
        %1875 = vmatpush1.bf16.msra.mxu0 %v1835
        %1876 = vmatprep.subr.bf16.mxu0 0
        %1877 = vmatpush1.bf16.msra.mxu0 %v1836
        %1878 = vmatprep.subr.bf16.mxu0 0
        %1879 = vmatpush1.bf16.msra.mxu0 %v1837
        %1880 = vmatprep.subr.bf16.mxu0 0
        %1881 = vmatpush1.bf16.msra.mxu0 %v1838
        %1882 = vmatprep.subr.bf16.mxu0 0
        %1883 = vmatpush1.bf16.msra.mxu0 %v1856
        %1884 = vmatprep.subr.bf16.mxu0 0
        %1885 = vmatpush1.bf16.msra.mxu0 0
        %1886 = vmatprep.subr.bf16.mxu0 0
        %1887 = vmatpush1.bf16.msra.mxu0 0
        %1888 = vmatprep.subr.bf16.mxu0 0
        %1889 = vmatpush1.bf16.msra.mxu0 0
        %1890 = vmatprep.mubr.bf16.mxu0 %v1853
        %1891 = vmatmul.mubr.bf16.gmra.mrb[0].mxu0 %v1774
        %v1892 = vpop.f32.mrb[0].mxu0
        %v1893 = vadd.f32 0.0, %v1892
        %v1894 = vpop.f32.mrb[0].mxu0
        %v1895 = vpop.f32.mrb[0].mxu0
        %v1896 = vpop.f32.mrb[0].mxu0
        %1897 = vdwg.mxu0
        %v1898 = vadd.f32 %v1747, %v1893
        %s1899 = scalar_lea.vmem %s3, 1000
        %v1900 = vld [vmem:[%s1899] sm:$0xf]
        %v1901 = vld [vmem:[%s1899 + $0x4] sm:$0xf]
        %v1902 = vld [vmem:[%s1899 + $0x8] sm:$0xf]
        %v1903 = vld [vmem:[%s1899 + $0xc] sm:$0xf]
        %v1904 = vld [vmem:[%s1899 + $0x10] sm:$0xf]
        %v1905 = vld [vmem:[%s1899 + $0x14] sm:$0xf]
        %v1906 = vld [vmem:[%s1899 + $0x18] sm:$0xf]
        %v1907 = vld [vmem:[%s1899 + $0x1c] sm:$0xf]
        %v1908 = vld [vmem:[%s1899 + $0x20] sm:$0xf]
        %v1909 = vld [vmem:[%s1899 + $0x24] sm:$0xf]
        %v1910 = vld [vmem:[%s1899 + $0x28] sm:$0xf]
        %v1911 = vld [vmem:[%s1899 + $0x2c] sm:$0xf]
        %v1912 = vld [vmem:[%s1899 + $0x30] sm:$0xf]
        %v1913 = vld [vmem:[%s1899 + $0x34] sm:$0xf]
        %v1914 = vld [vmem:[%s1899 + $0x38] sm:$0xf]
        %v1915 = vld [vmem:[%s1899 + $0x3c] sm:$0xf]
        %v1916 = vld [vmem:[%s1899 + $0x40] sm:$0xf]
        %v1917 = vld [vmem:[%s1899 + $0x44] sm:$0xf]
        %v1918 = vld [vmem:[%s1899 + $0x48] sm:$0xf]
        %v1919 = vld [vmem:[%s1899 + $0x4c] sm:$0xf]
        %v1920 = vld [vmem:[%s1899 + $0x50] sm:$0xf]
        %v1921 = vld [vmem:[%s1899 + $0x54] sm:$0xf]
        %v1922 = vld [vmem:[%s1899 + $0x58] sm:$0xf]
        %v1923 = vld [vmem:[%s1899 + $0x5c] sm:$0xf]
        %v1924 = vld [vmem:[%s1899 + $0x60] sm:$0x3]
        %v1925 = vrot.slane %v384, 5
        %v1926 = vrot.slane %v385, 5
        %v1953 = vunpack.c.l.b16 %v1900
        %v1954 = vunpack.c.l.b16 %v1901
        %v1955 = vunpack.c.l.b16 %v1902
        %v1956 = vunpack.c.l.b16 %v1903
        %v1957 = vunpack.c.l.b16 %v1904
        %v1958 = vunpack.c.l.b16 %v1905
        %v1959 = vunpack.c.l.b16 %v1906
        %v1960 = vunpack.c.l.b16 %v1907
        %v1961 = vunpack.c.l.b16 %v1908
        %v1962 = vunpack.c.l.b16 %v1909
        %v1963 = vunpack.c.l.b16 %v1910
        %v1964 = vunpack.c.l.b16 %v1911
        %v1965 = vunpack.c.l.b16 %v1912
        %v1966 = vunpack.c.l.b16 %v1913
        %v1967 = vunpack.c.l.b16 %v1914
        %v1968 = vunpack.c.l.b16 %v1915
        %v1969 = vunpack.c.l.b16 %v1916
        %v1970 = vunpack.c.l.b16 %v1917
        %v1971 = vunpack.c.l.b16 %v1918
        %v1972 = vunpack.c.l.b16 %v1919
        %v1973 = vunpack.c.l.b16 %v1920
        %v1974 = vunpack.c.l.b16 %v1921
        %v1975 = vunpack.c.l.b16 %v1922
        %v1976 = vunpack.c.l.b16 %v1923
        %v1977 = vunpack.c.l.b16 %v1924
        %v1978 = vpack.c.b16 %v1954, %v1953
        %v1979 = vpack.c.b16 %v1956, %v1955
        %v1980 = vpack.c.b16 %v1958, %v1957
        %v1981 = vpack.c.b16 %v1960, %v1959
        %v1982 = vpack.c.b16 %v1962, %v1961
        %v1983 = vpack.c.b16 %v1964, %v1963
        %v1984 = vpack.c.b16 %v1966, %v1965
        %v1985 = vpack.c.b16 %v1968, %v1967
        %v1986 = vpack.c.b16 %v1970, %v1969
        %v1987 = vpack.c.b16 %v1972, %v1971
        %v1988 = vpack.c.b16 %v1974, %v1973
        %v1989 = vpack.c.b16 %v1976, %v1975
        %v1990 = vpack.c.b16 %v1977, %v1977
        %v2004 = vsel %vm487, %v1926, 0
        %v2007 = vsel %vm330, %v1990, 0
        %2009 = vmatprep.subr.bf16.mxu0 0
        %2010 = vmatpush1.bf16.msra.mxu0 %v1978
        %2011 = vmatprep.subr.bf16.mxu0 0
        %2012 = vmatpush1.bf16.msra.mxu0 %v1979
        %2013 = vmatprep.subr.bf16.mxu0 0
        %2014 = vmatpush1.bf16.msra.mxu0 %v1980
        %2015 = vmatprep.subr.bf16.mxu0 0
        %2016 = vmatpush1.bf16.msra.mxu0 %v1981
        %2017 = vmatprep.subr.bf16.mxu0 0
        %2018 = vmatpush1.bf16.msra.mxu0 %v1982
        %2019 = vmatprep.subr.bf16.mxu0 0
        %2020 = vmatpush1.bf16.msra.mxu0 %v1983
        %2021 = vmatprep.subr.bf16.mxu0 0
        %2022 = vmatpush1.bf16.msra.mxu0 %v1984
        %2023 = vmatprep.subr.bf16.mxu0 0
        %2024 = vmatpush1.bf16.msra.mxu0 %v1985
        %2025 = vmatprep.subr.bf16.mxu0 0
        %2026 = vmatpush1.bf16.msra.mxu0 %v1986
        %2027 = vmatprep.subr.bf16.mxu0 0
        %2028 = vmatpush1.bf16.msra.mxu0 %v1987
        %2029 = vmatprep.subr.bf16.mxu0 0
        %2030 = vmatpush1.bf16.msra.mxu0 %v1988
        %2031 = vmatprep.subr.bf16.mxu0 0
        %2032 = vmatpush1.bf16.msra.mxu0 %v1989
        %2033 = vmatprep.subr.bf16.mxu0 0
        %2034 = vmatpush1.bf16.msra.mxu0 %v2007
        %2035 = vmatprep.subr.bf16.mxu0 0
        %2036 = vmatpush1.bf16.msra.mxu0 0
        %2037 = vmatprep.subr.bf16.mxu0 0
        %2038 = vmatpush1.bf16.msra.mxu0 0
        %2039 = vmatprep.subr.bf16.mxu0 0
        %2040 = vmatpush1.bf16.msra.mxu0 0
        %2041 = vmatprep.mubr.bf16.mxu0 %v2004
        %2042 = vmatmul.mubr.bf16.gmra.mrb[0].mxu0 %v1925
        %v2043 = vpop.f32.mrb[0].mxu0
        %v2044 = vadd.f32 0.0, %v2043
        %v2045 = vpop.f32.mrb[0].mxu0
        %v2046 = vpop.f32.mrb[0].mxu0
        %v2047 = vpop.f32.mrb[0].mxu0
        %2048 = vdwg.mxu0
        %v2049 = vadd.f32 %v1898, %v2044
        %s2050 = scalar_lea.vmem %s3, 1100
        %v2051 = vld [vmem:[%s2050] sm:$0xf]
        %v2052 = vld [vmem:[%s2050 + $0x4] sm:$0xf]
        %v2053 = vld [vmem:[%s2050 + $0x8] sm:$0xf]
        %v2054 = vld [vmem:[%s2050 + $0xc] sm:$0xf]
        %v2055 = vld [vmem:[%s2050 + $0x10] sm:$0xf]
        %v2056 = vld [vmem:[%s2050 + $0x14] sm:$0xf]
        %v2057 = vld [vmem:[%s2050 + $0x18] sm:$0xf]
        %v2058 = vld [vmem:[%s2050 + $0x1c] sm:$0xf]
        %v2059 = vld [vmem:[%s2050 + $0x20] sm:$0xf]
        %v2060 = vld [vmem:[%s2050 + $0x24] sm:$0xf]
        %v2061 = vld [vmem:[%s2050 + $0x28] sm:$0xf]
        %v2062 = vld [vmem:[%s2050 + $0x2c] sm:$0xf]
        %v2063 = vld [vmem:[%s2050 + $0x30] sm:$0xf]
        %v2064 = vld [vmem:[%s2050 + $0x34] sm:$0xf]
        %v2065 = vld [vmem:[%s2050 + $0x38] sm:$0xf]
        %v2066 = vld [vmem:[%s2050 + $0x3c] sm:$0xf]
        %v2067 = vld [vmem:[%s2050 + $0x40] sm:$0xf]
        %v2068 = vld [vmem:[%s2050 + $0x44] sm:$0xf]
        %v2069 = vld [vmem:[%s2050 + $0x48] sm:$0xf]
        %v2070 = vld [vmem:[%s2050 + $0x4c] sm:$0xf]
        %v2071 = vld [vmem:[%s2050 + $0x50] sm:$0xf]
        %v2072 = vld [vmem:[%s2050 + $0x54] sm:$0xf]
        %v2073 = vld [vmem:[%s2050 + $0x58] sm:$0xf]
        %v2074 = vld [vmem:[%s2050 + $0x5c] sm:$0xf]
        %v2075 = vld [vmem:[%s2050 + $0x60] sm:$0x3]
        %v2076 = vrot.slane %v562, 5
        %v2077 = vrot.slane %v564, 5
        %v2104 = vunpack.c.l.b16 %v2051
        %v2105 = vunpack.c.l.b16 %v2052
        %v2106 = vunpack.c.l.b16 %v2053
        %v2107 = vunpack.c.l.b16 %v2054
        %v2108 = vunpack.c.l.b16 %v2055
        %v2109 = vunpack.c.l.b16 %v2056
        %v2110 = vunpack.c.l.b16 %v2057
        %v2111 = vunpack.c.l.b16 %v2058
        %v2112 = vunpack.c.l.b16 %v2059
        %v2113 = vunpack.c.l.b16 %v2060
        %v2114 = vunpack.c.l.b16 %v2061
        %v2115 = vunpack.c.l.b16 %v2062
        %v2116 = vunpack.c.l.b16 %v2063
        %v2117 = vunpack.c.l.b16 %v2064
        %v2118 = vunpack.c.l.b16 %v2065
        %v2119 = vunpack.c.l.b16 %v2066
        %v2120 = vunpack.c.l.b16 %v2067
        %v2121 = vunpack.c.l.b16 %v2068
        %v2122 = vunpack.c.l.b16 %v2069
        %v2123 = vunpack.c.l.b16 %v2070
        %v2124 = vunpack.c.l.b16 %v2071
        %v2125 = vunpack.c.l.b16 %v2072
        %v2126 = vunpack.c.l.b16 %v2073
        %v2127 = vunpack.c.l.b16 %v2074
        %v2128 = vunpack.c.l.b16 %v2075
        %v2129 = vpack.c.b16 %v2105, %v2104
        %v2130 = vpack.c.b16 %v2107, %v2106
        %v2131 = vpack.c.b16 %v2109, %v2108
        %v2132 = vpack.c.b16 %v2111, %v2110
        %v2133 = vpack.c.b16 %v2113, %v2112
        %v2134 = vpack.c.b16 %v2115, %v2114
        %v2135 = vpack.c.b16 %v2117, %v2116
        %v2136 = vpack.c.b16 %v2119, %v2118
        %v2137 = vpack.c.b16 %v2121, %v2120
        %v2138 = vpack.c.b16 %v2123, %v2122
        %v2139 = vpack.c.b16 %v2125, %v2124
        %v2140 = vpack.c.b16 %v2127, %v2126
        %v2141 = vpack.c.b16 %v2128, %v2128
        %v2155 = vsel %vm487, %v2077, 0
        %v2158 = vsel %vm330, %v2141, 0
        %2160 = vmatprep.subr.bf16.mxu0 0
        %2161 = vmatpush1.bf16.msra.mxu0 %v2129
        %2162 = vmatprep.subr.bf16.mxu0 0
        %2163 = vmatpush1.bf16.msra.mxu0 %v2130
        %2164 = vmatprep.subr.bf16.mxu0 0
        %2165 = vmatpush1.bf16.msra.mxu0 %v2131
        %2166 = vmatprep.subr.bf16.mxu0 0
        %2167 = vmatpush1.bf16.msra.mxu0 %v2132
        %2168 = vmatprep.subr.bf16.mxu0 0
        %2169 = vmatpush1.bf16.msra.mxu0 %v2133
        %2170 = vmatprep.subr.bf16.mxu0 0
        %2171 = vmatpush1.bf16.msra.mxu0 %v2134
        %2172 = vmatprep.subr.bf16.mxu0 0
        %2173 = vmatpush1.bf16.msra.mxu0 %v2135
        %2174 = vmatprep.subr.bf16.mxu0 0
        %2175 = vmatpush1.bf16.msra.mxu0 %v2136
        %2176 = vmatprep.subr.bf16.mxu0 0
        %2177 = vmatpush1.bf16.msra.mxu0 %v2137
        %2178 = vmatprep.subr.bf16.mxu0 0
        %2179 = vmatpush1.bf16.msra.mxu0 %v2138
        %2180 = vmatprep.subr.bf16.mxu0 0
        %2181 = vmatpush1.bf16.msra.mxu0 %v2139
        %2182 = vmatprep.subr.bf16.mxu0 0
        %2183 = vmatpush1.bf16.msra.mxu0 %v2140
        %2184 = vmatprep.subr.bf16.mxu0 0
        %2185 = vmatpush1.bf16.msra.mxu0 %v2158
        %2186 = vmatprep.subr.bf16.mxu0 0
        %2187 = vmatpush1.bf16.msra.mxu0 0
        %2188 = vmatprep.subr.bf16.mxu0 0
        %2189 = vmatpush1.bf16.msra.mxu0 0
        %2190 = vmatprep.subr.bf16.mxu0 0
        %2191 = vmatpush1.bf16.msra.mxu0 0
        %2192 = vmatprep.mubr.bf16.mxu0 %v2155
        %2193 = vmatmul.mubr.bf16.gmra.mrb[0].mxu0 %v2076
        %v2194 = vpop.f32.mrb[0].mxu0
        %v2195 = vadd.f32 0.0, %v2194
        %v2196 = vpop.f32.mrb[0].mxu0
        %v2197 = vpop.f32.mrb[0].mxu0
        %v2198 = vpop.f32.mrb[0].mxu0
        %2199 = vdwg.mxu0
        %v2200 = vadd.f32 %v2049, %v2195
        %s2201 = scalar_lea.vmem %s3, 1200
        %v2202 = vld [vmem:[%s2201] sm:$0xf]
        %v2203 = vld [vmem:[%s2201 + $0x4] sm:$0xf]
        %v2204 = vld [vmem:[%s2201 + $0x8] sm:$0xf]
        %v2205 = vld [vmem:[%s2201 + $0xc] sm:$0xf]
        %v2206 = vld [vmem:[%s2201 + $0x10] sm:$0xf]
        %v2207 = vld [vmem:[%s2201 + $0x14] sm:$0xf]
        %v2208 = vld [vmem:[%s2201 + $0x18] sm:$0xf]
        %v2209 = vld [vmem:[%s2201 + $0x1c] sm:$0xf]
        %v2210 = vld [vmem:[%s2201 + $0x20] sm:$0xf]
        %v2211 = vld [vmem:[%s2201 + $0x24] sm:$0xf]
        %v2212 = vld [vmem:[%s2201 + $0x28] sm:$0xf]
        %v2213 = vld [vmem:[%s2201 + $0x2c] sm:$0xf]
        %v2214 = vld [vmem:[%s2201 + $0x30] sm:$0xf]
        %v2215 = vld [vmem:[%s2201 + $0x34] sm:$0xf]
        %v2216 = vld [vmem:[%s2201 + $0x38] sm:$0xf]
        %v2217 = vld [vmem:[%s2201 + $0x3c] sm:$0xf]
        %v2218 = vld [vmem:[%s2201 + $0x40] sm:$0xf]
        %v2219 = vld [vmem:[%s2201 + $0x44] sm:$0xf]
        %v2220 = vld [vmem:[%s2201 + $0x48] sm:$0xf]
        %v2221 = vld [vmem:[%s2201 + $0x4c] sm:$0xf]
        %v2222 = vld [vmem:[%s2201 + $0x50] sm:$0xf]
        %v2223 = vld [vmem:[%s2201 + $0x54] sm:$0xf]
        %v2224 = vld [vmem:[%s2201 + $0x58] sm:$0xf]
        %v2225 = vld [vmem:[%s2201 + $0x5c] sm:$0xf]
        %v2226 = vld [vmem:[%s2201 + $0x60] sm:$0x3]
        %v2227 = vrot.slane %v384, 6
        %v2228 = vrot.slane %v385, 6
        %v2255 = vunpack.c.l.b16 %v2202
        %v2256 = vunpack.c.l.b16 %v2203
        %v2257 = vunpack.c.l.b16 %v2204
        %v2258 = vunpack.c.l.b16 %v2205
        %v2259 = vunpack.c.l.b16 %v2206
        %v2260 = vunpack.c.l.b16 %v2207
        %v2261 = vunpack.c.l.b16 %v2208
        %v2262 = vunpack.c.l.b16 %v2209
        %v2263 = vunpack.c.l.b16 %v2210
        %v2264 = vunpack.c.l.b16 %v2211
        %v2265 = vunpack.c.l.b16 %v2212
        %v2266 = vunpack.c.l.b16 %v2213
        %v2267 = vunpack.c.l.b16 %v2214
        %v2268 = vunpack.c.l.b16 %v2215
        %v2269 = vunpack.c.l.b16 %v2216
        %v2270 = vunpack.c.l.b16 %v2217
        %v2271 = vunpack.c.l.b16 %v2218
        %v2272 = vunpack.c.l.b16 %v2219
        %v2273 = vunpack.c.l.b16 %v2220
        %v2274 = vunpack.c.l.b16 %v2221
        %v2275 = vunpack.c.l.b16 %v2222
        %v2276 = vunpack.c.l.b16 %v2223
        %v2277 = vunpack.c.l.b16 %v2224
        %v2278 = vunpack.c.l.b16 %v2225
        %v2279 = vunpack.c.l.b16 %v2226
        %v2280 = vpack.c.b16 %v2256, %v2255
        %v2281 = vpack.c.b16 %v2258, %v2257
        %v2282 = vpack.c.b16 %v2260, %v2259
        %v2283 = vpack.c.b16 %v2262, %v2261
        %v2284 = vpack.c.b16 %v2264, %v2263
        %v2285 = vpack.c.b16 %v2266, %v2265
        %v2286 = vpack.c.b16 %v2268, %v2267
        %v2287 = vpack.c.b16 %v2270, %v2269
        %v2288 = vpack.c.b16 %v2272, %v2271
        %v2289 = vpack.c.b16 %v2274, %v2273
        %v2290 = vpack.c.b16 %v2276, %v2275
        %v2291 = vpack.c.b16 %v2278, %v2277
        %v2292 = vpack.c.b16 %v2279, %v2279
        %v2306 = vsel %vm487, %v2228, 0
        %v2309 = vsel %vm330, %v2292, 0
        %2311 = vmatprep.subr.bf16.mxu0 0
        %2312 = vmatpush1.bf16.msra.mxu0 %v2280
        %2313 = vmatprep.subr.bf16.mxu0 0
        %2314 = vmatpush1.bf16.msra.mxu0 %v2281
        %2315 = vmatprep.subr.bf16.mxu0 0
        %2316 = vmatpush1.bf16.msra.mxu0 %v2282
        %2317 = vmatprep.subr.bf16.mxu0 0
        %2318 = vmatpush1.bf16.msra.mxu0 %v2283
        %2319 = vmatprep.subr.bf16.mxu0 0
        %2320 = vmatpush1.bf16.msra.mxu0 %v2284
        %2321 = vmatprep.subr.bf16.mxu0 0
        %2322 = vmatpush1.bf16.msra.mxu0 %v2285
        %2323 = vmatprep.subr.bf16.mxu0 0
        %2324 = vmatpush1.bf16.msra.mxu0 %v2286
        %2325 = vmatprep.subr.bf16.mxu0 0
        %2326 = vmatpush1.bf16.msra.mxu0 %v2287
        %2327 = vmatprep.subr.bf16.mxu0 0
        %2328 = vmatpush1.bf16.msra.mxu0 %v2288
        %2329 = vmatprep.subr.bf16.mxu0 0
        %2330 = vmatpush1.bf16.msra.mxu0 %v2289
        %2331 = vmatprep.subr.bf16.mxu0 0
        %2332 = vmatpush1.bf16.msra.mxu0 %v2290
        %2333 = vmatprep.subr.bf16.mxu0 0
        %2334 = vmatpush1.bf16.msra.mxu0 %v2291
        %2335 = vmatprep.subr.bf16.mxu0 0
        %2336 = vmatpush1.bf16.msra.mxu0 %v2309
        %2337 = vmatprep.subr.bf16.mxu0 0
        %2338 = vmatpush1.bf16.msra.mxu0 0
        %2339 = vmatprep.subr.bf16.mxu0 0
        %2340 = vmatpush1.bf16.msra.mxu0 0
        %2341 = vmatprep.subr.bf16.mxu0 0
        %2342 = vmatpush1.bf16.msra.mxu0 0
        %2343 = vmatprep.mubr.bf16.mxu0 %v2306
        %2344 = vmatmul.mubr.bf16.gmra.mrb[0].mxu0 %v2227
        %v2345 = vpop.f32.mrb[0].mxu0
        %v2346 = vadd.f32 0.0, %v2345
        %v2347 = vpop.f32.mrb[0].mxu0
        %v2348 = vpop.f32.mrb[0].mxu0
        %v2349 = vpop.f32.mrb[0].mxu0
        %2350 = vdwg.mxu0
        %v2351 = vadd.f32 %v2200, %v2346
        %s2352 = scalar_lea.vmem %s3, 1300
        %v2353 = vld [vmem:[%s2352] sm:$0xf]
        %v2354 = vld [vmem:[%s2352 + $0x4] sm:$0xf]
        %v2355 = vld [vmem:[%s2352 + $0x8] sm:$0xf]
        %v2356 = vld [vmem:[%s2352 + $0xc] sm:$0xf]
        %v2357 = vld [vmem:[%s2352 + $0x10] sm:$0xf]
        %v2358 = vld [vmem:[%s2352 + $0x14] sm:$0xf]
        %v2359 = vld [vmem:[%s2352 + $0x18] sm:$0xf]
        %v2360 = vld [vmem:[%s2352 + $0x1c] sm:$0xf]
        %v2361 = vld [vmem:[%s2352 + $0x20] sm:$0xf]
        %v2362 = vld [vmem:[%s2352 + $0x24] sm:$0xf]
        %v2363 = vld [vmem:[%s2352 + $0x28] sm:$0xf]
        %v2364 = vld [vmem:[%s2352 + $0x2c] sm:$0xf]
        %v2365 = vld [vmem:[%s2352 + $0x30] sm:$0xf]
        %v2366 = vld [vmem:[%s2352 + $0x34] sm:$0xf]
        %v2367 = vld [vmem:[%s2352 + $0x38] sm:$0xf]
        %v2368 = vld [vmem:[%s2352 + $0x3c] sm:$0xf]
        %v2369 = vld [vmem:[%s2352 + $0x40] sm:$0xf]
        %v2370 = vld [vmem:[%s2352 + $0x44] sm:$0xf]
        %v2371 = vld [vmem:[%s2352 + $0x48] sm:$0xf]
        %v2372 = vld [vmem:[%s2352 + $0x4c] sm:$0xf]
        %v2373 = vld [vmem:[%s2352 + $0x50] sm:$0xf]
        %v2374 = vld [vmem:[%s2352 + $0x54] sm:$0xf]
        %v2375 = vld [vmem:[%s2352 + $0x58] sm:$0xf]
        %v2376 = vld [vmem:[%s2352 + $0x5c] sm:$0xf]
        %v2377 = vld [vmem:[%s2352 + $0x60] sm:$0x3]
        %v2378 = vrot.slane %v562, 6
        %v2379 = vrot.slane %v564, 6
        %v2406 = vunpack.c.l.b16 %v2353
        %v2407 = vunpack.c.l.b16 %v2354
        %v2408 = vunpack.c.l.b16 %v2355
        %v2409 = vunpack.c.l.b16 %v2356
        %v2410 = vunpack.c.l.b16 %v2357
        %v2411 = vunpack.c.l.b16 %v2358
        %v2412 = vunpack.c.l.b16 %v2359
        %v2413 = vunpack.c.l.b16 %v2360
        %v2414 = vunpack.c.l.b16 %v2361
        %v2415 = vunpack.c.l.b16 %v2362
        %v2416 = vunpack.c.l.b16 %v2363
        %v2417 = vunpack.c.l.b16 %v2364
        %v2418 = vunpack.c.l.b16 %v2365
        %v2419 = vunpack.c.l.b16 %v2366
        %v2420 = vunpack.c.l.b16 %v2367
        %v2421 = vunpack.c.l.b16 %v2368
        %v2422 = vunpack.c.l.b16 %v2369
        %v2423 = vunpack.c.l.b16 %v2370
        %v2424 = vunpack.c.l.b16 %v2371
        %v2425 = vunpack.c.l.b16 %v2372
        %v2426 = vunpack.c.l.b16 %v2373
        %v2427 = vunpack.c.l.b16 %v2374
        %v2428 = vunpack.c.l.b16 %v2375
        %v2429 = vunpack.c.l.b16 %v2376
        %v2430 = vunpack.c.l.b16 %v2377
        %v2431 = vpack.c.b16 %v2407, %v2406
        %v2432 = vpack.c.b16 %v2409, %v2408
        %v2433 = vpack.c.b16 %v2411, %v2410
        %v2434 = vpack.c.b16 %v2413, %v2412
        %v2435 = vpack.c.b16 %v2415, %v2414
        %v2436 = vpack.c.b16 %v2417, %v2416
        %v2437 = vpack.c.b16 %v2419, %v2418
        %v2438 = vpack.c.b16 %v2421, %v2420
        %v2439 = vpack.c.b16 %v2423, %v2422
        %v2440 = vpack.c.b16 %v2425, %v2424
        %v2441 = vpack.c.b16 %v2427, %v2426
        %v2442 = vpack.c.b16 %v2429, %v2428
        %v2443 = vpack.c.b16 %v2430, %v2430
        %v2457 = vsel %vm487, %v2379, 0
        %v2460 = vsel %vm330, %v2443, 0
        %2462 = vmatprep.subr.bf16.mxu0 0
        %2463 = vmatpush1.bf16.msra.mxu0 %v2431
        %2464 = vmatprep.subr.bf16.mxu0 0
        %2465 = vmatpush1.bf16.msra.mxu0 %v2432
        %2466 = vmatprep.subr.bf16.mxu0 0
        %2467 = vmatpush1.bf16.msra.mxu0 %v2433
        %2468 = vmatprep.subr.bf16.mxu0 0
        %2469 = vmatpush1.bf16.msra.mxu0 %v2434
        %2470 = vmatprep.subr.bf16.mxu0 0
        %2471 = vmatpush1.bf16.msra.mxu0 %v2435
        %2472 = vmatprep.subr.bf16.mxu0 0
        %2473 = vmatpush1.bf16.msra.mxu0 %v2436
        %2474 = vmatprep.subr.bf16.mxu0 0
        %2475 = vmatpush1.bf16.msra.mxu0 %v2437
        %2476 = vmatprep.subr.bf16.mxu0 0
        %2477 = vmatpush1.bf16.msra.mxu0 %v2438
        %2478 = vmatprep.subr.bf16.mxu0 0
        %2479 = vmatpush1.bf16.msra.mxu0 %v2439
        %2480 = vmatprep.subr.bf16.mxu0 0
        %2481 = vmatpush1.bf16.msra.mxu0 %v2440
        %2482 = vmatprep.subr.bf16.mxu0 0
        %2483 = vmatpush1.bf16.msra.mxu0 %v2441
        %2484 = vmatprep.subr.bf16.mxu0 0
        %2485 = vmatpush1.bf16.msra.mxu0 %v2442
        %2486 = vmatprep.subr.bf16.mxu0 0
        %2487 = vmatpush1.bf16.msra.mxu0 %v2460
        %2488 = vmatprep.subr.bf16.mxu0 0
        %2489 = vmatpush1.bf16.msra.mxu0 0
        %2490 = vmatprep.subr.bf16.mxu0 0
        %2491 = vmatpush1.bf16.msra.mxu0 0
        %2492 = vmatprep.subr.bf16.mxu0 0
        %2493 = vmatpush1.bf16.msra.mxu0 0
        %2494 = vmatprep.mubr.bf16.mxu0 %v2457
        %2495 = vmatmul.mubr.bf16.gmra.mrb[0].mxu0 %v2378
        %v2496 = vpop.f32.mrb[0].mxu0
        %v2497 = vadd.f32 0.0, %v2496
        %v2498 = vpop.f32.mrb[0].mxu0
        %v2499 = vpop.f32.mrb[0].mxu0
        %v2500 = vpop.f32.mrb[0].mxu0
        %2501 = vdwg.mxu0
        %v2502 = vadd.f32 %v2351, %v2497
        %s2503 = scalar_lea.vmem %s3, 1400
        %v2504 = vld [vmem:[%s2503] sm:$0xf]
        %v2505 = vld [vmem:[%s2503 + $0x4] sm:$0xf]
        %v2506 = vld [vmem:[%s2503 + $0x8] sm:$0xf]
        %v2507 = vld [vmem:[%s2503 + $0xc] sm:$0xf]
        %v2508 = vld [vmem:[%s2503 + $0x10] sm:$0xf]
        %v2509 = vld [vmem:[%s2503 + $0x14] sm:$0xf]
        %v2510 = vld [vmem:[%s2503 + $0x18] sm:$0xf]
        %v2511 = vld [vmem:[%s2503 + $0x1c] sm:$0xf]
        %v2512 = vld [vmem:[%s2503 + $0x20] sm:$0xf]
        %v2513 = vld [vmem:[%s2503 + $0x24] sm:$0xf]
        %v2514 = vld [vmem:[%s2503 + $0x28] sm:$0xf]
        %v2515 = vld [vmem:[%s2503 + $0x2c] sm:$0xf]
        %v2516 = vld [vmem:[%s2503 + $0x30] sm:$0xf]
        %v2517 = vld [vmem:[%s2503 + $0x34] sm:$0xf]
        %v2518 = vld [vmem:[%s2503 + $0x38] sm:$0xf]
        %v2519 = vld [vmem:[%s2503 + $0x3c] sm:$0xf]
        %v2520 = vld [vmem:[%s2503 + $0x40] sm:$0xf]
        %v2521 = vld [vmem:[%s2503 + $0x44] sm:$0xf]
        %v2522 = vld [vmem:[%s2503 + $0x48] sm:$0xf]
        %v2523 = vld [vmem:[%s2503 + $0x4c] sm:$0xf]
        %v2524 = vld [vmem:[%s2503 + $0x50] sm:$0xf]
        %v2525 = vld [vmem:[%s2503 + $0x54] sm:$0xf]
        %v2526 = vld [vmem:[%s2503 + $0x58] sm:$0xf]
        %v2527 = vld [vmem:[%s2503 + $0x5c] sm:$0xf]
        %v2528 = vld [vmem:[%s2503 + $0x60] sm:$0x3]
        %v2529 = vrot.slane %v384, 7
        %v2530 = vrot.slane %v385, 7
        %v2557 = vunpack.c.l.b16 %v2504
        %v2558 = vunpack.c.l.b16 %v2505
        %v2559 = vunpack.c.l.b16 %v2506
        %v2560 = vunpack.c.l.b16 %v2507
        %v2561 = vunpack.c.l.b16 %v2508
        %v2562 = vunpack.c.l.b16 %v2509
        %v2563 = vunpack.c.l.b16 %v2510
        %v2564 = vunpack.c.l.b16 %v2511
        %v2565 = vunpack.c.l.b16 %v2512
        %v2566 = vunpack.c.l.b16 %v2513
        %v2567 = vunpack.c.l.b16 %v2514
        %v2568 = vunpack.c.l.b16 %v2515
        %v2569 = vunpack.c.l.b16 %v2516
        %v2570 = vunpack.c.l.b16 %v2517
        %v2571 = vunpack.c.l.b16 %v2518
        %v2572 = vunpack.c.l.b16 %v2519
        %v2573 = vunpack.c.l.b16 %v2520
        %v2574 = vunpack.c.l.b16 %v2521
        %v2575 = vunpack.c.l.b16 %v2522
        %v2576 = vunpack.c.l.b16 %v2523
        %v2577 = vunpack.c.l.b16 %v2524
        %v2578 = vunpack.c.l.b16 %v2525
        %v2579 = vunpack.c.l.b16 %v2526
        %v2580 = vunpack.c.l.b16 %v2527
        %v2581 = vunpack.c.l.b16 %v2528
        %v2582 = vpack.c.b16 %v2558, %v2557
        %v2583 = vpack.c.b16 %v2560, %v2559
        %v2584 = vpack.c.b16 %v2562, %v2561
        %v2585 = vpack.c.b16 %v2564, %v2563
        %v2586 = vpack.c.b16 %v2566, %v2565
        %v2587 = vpack.c.b16 %v2568, %v2567
        %v2588 = vpack.c.b16 %v2570, %v2569
        %v2589 = vpack.c.b16 %v2572, %v2571
        %v2590 = vpack.c.b16 %v2574, %v2573
        %v2591 = vpack.c.b16 %v2576, %v2575
        %v2592 = vpack.c.b16 %v2578, %v2577
        %v2593 = vpack.c.b16 %v2580, %v2579
        %v2594 = vpack.c.b16 %v2581, %v2581
        %v2608 = vsel %vm487, %v2530, 0
        %v2611 = vsel %vm330, %v2594, 0
        %2613 = vmatprep.subr.bf16.mxu0 0
        %2614 = vmatpush1.bf16.msra.mxu0 %v2582
        %2615 = vmatprep.subr.bf16.mxu0 0
        %2616 = vmatpush1.bf16.msra.mxu0 %v2583
        %2617 = vmatprep.subr.bf16.mxu0 0
        %2618 = vmatpush1.bf16.msra.mxu0 %v2584
        %2619 = vmatprep.subr.bf16.mxu0 0
        %2620 = vmatpush1.bf16.msra.mxu0 %v2585
        %2621 = vmatprep.subr.bf16.mxu0 0
        %2622 = vmatpush1.bf16.msra.mxu0 %v2586
        %2623 = vmatprep.subr.bf16.mxu0 0
        %2624 = vmatpush1.bf16.msra.mxu0 %v2587
        %2625 = vmatprep.subr.bf16.mxu0 0
        %2626 = vmatpush1.bf16.msra.mxu0 %v2588
        %2627 = vmatprep.subr.bf16.mxu0 0
        %2628 = vmatpush1.bf16.msra.mxu0 %v2589
        %2629 = vmatprep.subr.bf16.mxu0 0
        %2630 = vmatpush1.bf16.msra.mxu0 %v2590
        %2631 = vmatprep.subr.bf16.mxu0 0
        %2632 = vmatpush1.bf16.msra.mxu0 %v2591
        %2633 = vmatprep.subr.bf16.mxu0 0
        %2634 = vmatpush1.bf16.msra.mxu0 %v2592
        %2635 = vmatprep.subr.bf16.mxu0 0
        %2636 = vmatpush1.bf16.msra.mxu0 %v2593
        %2637 = vmatprep.subr.bf16.mxu0 0
        %2638 = vmatpush1.bf16.msra.mxu0 %v2611
        %2639 = vmatprep.subr.bf16.mxu0 0
        %2640 = vmatpush1.bf16.msra.mxu0 0
        %2641 = vmatprep.subr.bf16.mxu0 0
        %2642 = vmatpush1.bf16.msra.mxu0 0
        %2643 = vmatprep.subr.bf16.mxu0 0
        %2644 = vmatpush1.bf16.msra.mxu0 0
        %2645 = vmatprep.mubr.bf16.mxu0 %v2608
        %2646 = vmatmul.mubr.bf16.gmra.mrb[0].mxu0 %v2529
        %v2647 = vpop.f32.mrb[0].mxu0
        %v2648 = vadd.f32 0.0, %v2647
        %v2649 = vpop.f32.mrb[0].mxu0
        %v2650 = vpop.f32.mrb[0].mxu0
        %v2651 = vpop.f32.mrb[0].mxu0
        %2652 = vdwg.mxu0
        %v2653 = vadd.f32 %v2502, %v2648
        %s2654 = scalar_lea.vmem %s3, 1500
        %v2655 = vld [vmem:[%s2654] sm:$0xf]
        %v2656 = vld [vmem:[%s2654 + $0x4] sm:$0xf]
        %v2657 = vld [vmem:[%s2654 + $0x8] sm:$0xf]
        %v2658 = vld [vmem:[%s2654 + $0xc] sm:$0xf]
        %v2659 = vld [vmem:[%s2654 + $0x10] sm:$0xf]
        %v2660 = vld [vmem:[%s2654 + $0x14] sm:$0xf]
        %v2661 = vld [vmem:[%s2654 + $0x18] sm:$0xf]
        %v2662 = vld [vmem:[%s2654 + $0x1c] sm:$0xf]
        %v2663 = vld [vmem:[%s2654 + $0x20] sm:$0xf]
        %v2664 = vld [vmem:[%s2654 + $0x24] sm:$0xf]
        %v2665 = vld [vmem:[%s2654 + $0x28] sm:$0xf]
        %v2666 = vld [vmem:[%s2654 + $0x2c] sm:$0xf]
        %v2667 = vld [vmem:[%s2654 + $0x30] sm:$0xf]
        %v2668 = vld [vmem:[%s2654 + $0x34] sm:$0xf]
        %v2669 = vld [vmem:[%s2654 + $0x38] sm:$0xf]
        %v2670 = vld [vmem:[%s2654 + $0x3c] sm:$0xf]
        %v2671 = vld [vmem:[%s2654 + $0x40] sm:$0xf]
        %v2672 = vld [vmem:[%s2654 + $0x44] sm:$0xf]
        %v2673 = vld [vmem:[%s2654 + $0x48] sm:$0xf]
        %v2674 = vld [vmem:[%s2654 + $0x4c] sm:$0xf]
        %v2675 = vld [vmem:[%s2654 + $0x50] sm:$0xf]
        %v2676 = vld [vmem:[%s2654 + $0x54] sm:$0xf]
        %v2677 = vld [vmem:[%s2654 + $0x58] sm:$0xf]
        %v2678 = vld [vmem:[%s2654 + $0x5c] sm:$0xf]
        %v2679 = vld [vmem:[%s2654 + $0x60] sm:$0x3]
        %v2680 = vrot.slane %v562, 7
        %v2681 = vrot.slane %v564, 7
        %v2708 = vunpack.c.l.b16 %v2655
        %v2709 = vunpack.c.l.b16 %v2656
        %v2710 = vunpack.c.l.b16 %v2657
        %v2711 = vunpack.c.l.b16 %v2658
        %v2712 = vunpack.c.l.b16 %v2659
        %v2713 = vunpack.c.l.b16 %v2660
        %v2714 = vunpack.c.l.b16 %v2661
        %v2715 = vunpack.c.l.b16 %v2662
        %v2716 = vunpack.c.l.b16 %v2663
        %v2717 = vunpack.c.l.b16 %v2664
        %v2718 = vunpack.c.l.b16 %v2665
        %v2719 = vunpack.c.l.b16 %v2666
        %v2720 = vunpack.c.l.b16 %v2667
        %v2721 = vunpack.c.l.b16 %v2668
        %v2722 = vunpack.c.l.b16 %v2669
        %v2723 = vunpack.c.l.b16 %v2670
        %v2724 = vunpack.c.l.b16 %v2671
        %v2725 = vunpack.c.l.b16 %v2672
        %v2726 = vunpack.c.l.b16 %v2673
        %v2727 = vunpack.c.l.b16 %v2674
        %v2728 = vunpack.c.l.b16 %v2675
        %v2729 = vunpack.c.l.b16 %v2676
        %v2730 = vunpack.c.l.b16 %v2677
        %v2731 = vunpack.c.l.b16 %v2678
        %v2732 = vunpack.c.l.b16 %v2679
        %v2733 = vpack.c.b16 %v2709, %v2708
        %v2734 = vpack.c.b16 %v2711, %v2710
        %v2735 = vpack.c.b16 %v2713, %v2712
        %v2736 = vpack.c.b16 %v2715, %v2714
        %v2737 = vpack.c.b16 %v2717, %v2716
        %v2738 = vpack.c.b16 %v2719, %v2718
        %v2739 = vpack.c.b16 %v2721, %v2720
        %v2740 = vpack.c.b16 %v2723, %v2722
        %v2741 = vpack.c.b16 %v2725, %v2724
        %v2742 = vpack.c.b16 %v2727, %v2726
        %v2743 = vpack.c.b16 %v2729, %v2728
        %v2744 = vpack.c.b16 %v2731, %v2730
        %v2745 = vpack.c.b16 %v2732, %v2732
        %v2759 = vsel %vm487, %v2681, 0
        %v2762 = vsel %vm330, %v2745, 0
        %2764 = vmatprep.subr.bf16.mxu0 0
        %2765 = vmatpush1.bf16.msra.mxu0 %v2733
        %2766 = vmatprep.subr.bf16.mxu0 0
        %2767 = vmatpush1.bf16.msra.mxu0 %v2734
        %2768 = vmatprep.subr.bf16.mxu0 0
        %2769 = vmatpush1.bf16.msra.mxu0 %v2735
        %2770 = vmatprep.subr.bf16.mxu0 0
        %2771 = vmatpush1.bf16.msra.mxu0 %v2736
        %2772 = vmatprep.subr.bf16.mxu0 0
        %2773 = vmatpush1.bf16.msra.mxu0 %v2737
        %2774 = vmatprep.subr.bf16.mxu0 0
        %2775 = vmatpush1.bf16.msra.mxu0 %v2738
        %2776 = vmatprep.subr.bf16.mxu0 0
        %2777 = vmatpush1.bf16.msra.mxu0 %v2739
        %2778 = vmatprep.subr.bf16.mxu0 0
        %2779 = vmatpush1.bf16.msra.mxu0 %v2740
        %2780 = vmatprep.subr.bf16.mxu0 0
        %2781 = vmatpush1.bf16.msra.mxu0 %v2741
        %2782 = vmatprep.subr.bf16.mxu0 0
        %2783 = vmatpush1.bf16.msra.mxu0 %v2742
        %2784 = vmatprep.subr.bf16.mxu0 0
        %2785 = vmatpush1.bf16.msra.mxu0 %v2743
        %2786 = vmatprep.subr.bf16.mxu0 0
        %2787 = vmatpush1.bf16.msra.mxu0 %v2744
        %2788 = vmatprep.subr.bf16.mxu0 0
        %2789 = vmatpush1.bf16.msra.mxu0 %v2762
        %2790 = vmatprep.subr.bf16.mxu0 0
        %2791 = vmatpush1.bf16.msra.mxu0 0
        %2792 = vmatprep.subr.bf16.mxu0 0
        %2793 = vmatpush1.bf16.msra.mxu0 0
        %2794 = vmatprep.subr.bf16.mxu0 0
        %2795 = vmatpush1.bf16.msra.mxu0 0
        %2796 = vmatprep.mubr.bf16.mxu0 %v2759
        %2797 = vmatmul.mubr.bf16.gmra.mrb[0].mxu0 %v2680
        %v2798 = vpop.f32.mrb[0].mxu0
        %v2799 = vadd.f32 0.0, %v2798
        %v2800 = vpop.f32.mrb[0].mxu0
        %v2801 = vpop.f32.mrb[0].mxu0
        %v2802 = vpop.f32.mrb[0].mxu0
        %2803 = vdwg.mxu0
        %v2804 = vadd.f32 %v2653, %v2799
        %v2805 = vmax.f32 %v2804, 0.0
        %v2806 = vpack.c.bf16 %v2805, %v2805
        %v2807 = vld [vmem:[%s5] sm:$0xf]
        %v2808 = vld [vmem:[%s5 + $0x4] sm:$0xf]
        %v2809 = vld [vmem:[%s5 + $0x8] sm:$0xf]
        %v2810 = vld [vmem:[%s5 + $0xc] sm:$0xf]
        %v2811 = vld [vmem:[%s5 + $0x10] sm:$0xf]
        %v2812 = vld [vmem:[%s5 + $0x14] sm:$0xf]
        %v2813 = vld [vmem:[%s5 + $0x18] sm:$0xf]
        %v2814 = vld [vmem:[%s5 + $0x1c] sm:$0xf]
        %v2815 = vld [vmem:[%s5 + $0x20] sm:$0xf]
        %v2816 = vld [vmem:[%s5 + $0x24] sm:$0xf]
        %v2817 = vld [vmem:[%s5 + $0x28] sm:$0xf]
        %v2818 = vld [vmem:[%s5 + $0x2c] sm:$0xf]
        %v2819 = vld [vmem:[%s5 + $0x30] sm:$0xf]
        %v2820 = vld [vmem:[%s5 + $0x34] sm:$0xf]
        %v2821 = vld [vmem:[%s5 + $0x38] sm:$0xf]
        %v2822 = vld [vmem:[%s5 + $0x3c] sm:$0xf]
        %v2823 = vld [vmem:[%s6] sm:$0x1]
        %v2840 = vunpack.c.l.b16 %v2807
        %v2841 = vunpack.c.l.b16 %v2808
        %v2842 = vunpack.c.l.b16 %v2809
        %v2843 = vunpack.c.l.b16 %v2810
        %v2844 = vunpack.c.l.b16 %v2811
        %v2845 = vunpack.c.l.b16 %v2812
        %v2846 = vunpack.c.l.b16 %v2813
        %v2847 = vunpack.c.l.b16 %v2814
        %v2848 = vunpack.c.l.b16 %v2815
        %v2849 = vunpack.c.l.b16 %v2816
        %v2850 = vunpack.c.l.b16 %v2817
        %v2851 = vunpack.c.l.b16 %v2818
        %v2852 = vunpack.c.l.b16 %v2819
        %v2853 = vunpack.c.l.b16 %v2820
        %v2854 = vunpack.c.l.b16 %v2821
        %v2855 = vunpack.c.l.b16 %v2822
        %v2856 = vpack.c.b16 %v2841, %v2840
        %v2857 = vpack.c.b16 %v2843, %v2842
        %v2858 = vpack.c.b16 %v2845, %v2844
        %v2859 = vpack.c.b16 %v2847, %v2846
        %v2860 = vpack.c.b16 %v2849, %v2848
        %v2861 = vpack.c.b16 %v2851, %v2850
        %v2862 = vpack.c.b16 %v2853, %v2852
        %v2863 = vpack.c.b16 %v2855, %v2854
        %2872 = vmatprep.subr.bf16.mxu0 0
        %2873 = vmatpush1.bf16.msra.mxu0 %v2856
        %2874 = vmatprep.subr.bf16.mxu0 0
        %2875 = vmatpush1.bf16.msra.mxu0 %v2857
        %2876 = vmatprep.subr.bf16.mxu0 0
        %2877 = vmatpush1.bf16.msra.mxu0 %v2858
        %2878 = vmatprep.subr.bf16.mxu0 0
        %2879 = vmatpush1.bf16.msra.mxu0 %v2859
        %2880 = vmatprep.subr.bf16.mxu0 0
        %2881 = vmatpush1.bf16.msra.mxu0 %v2860
        %2882 = vmatprep.subr.bf16.mxu0 0
        %2883 = vmatpush1.bf16.msra.mxu0 %v2861
        %2884 = vmatprep.subr.bf16.mxu0 0
        %2885 = vmatpush1.bf16.msra.mxu0 %v2862
        %2886 = vmatprep.subr.bf16.mxu0 0
        %2887 = vmatpush1.bf16.msra.mxu0 %v2863
        %2888 = vmatprep.subr.bf16.mxu0 0
        %2889 = vmatpush1.bf16.msra.mxu0 0
        %2890 = vmatprep.subr.bf16.mxu0 0
        %2891 = vmatpush1.bf16.msra.mxu0 0
        %2892 = vmatprep.subr.bf16.mxu0 0
        %2893 = vmatpush1.bf16.msra.mxu0 0
        %2894 = vmatprep.subr.bf16.mxu0 0
        %2895 = vmatpush1.bf16.msra.mxu0 0
        %2896 = vmatprep.subr.bf16.mxu0 0
        %2897 = vmatpush1.bf16.msra.mxu0 0
        %2898 = vmatprep.subr.bf16.mxu0 0
        %2899 = vmatpush1.bf16.msra.mxu0 0
        %2900 = vmatprep.subr.bf16.mxu0 0
        %2901 = vmatpush1.bf16.msra.mxu0 0
        %2902 = vmatprep.subr.bf16.mxu0 0
        %2903 = vmatpush1.bf16.msra.mxu0 0
        %2904 = vmatprep.mubr.bf16.mxu0 0
        %2905 = vmatmul.mubr.bf16.gmra.mrb[0].mxu0 %v2806
        %v2906 = vpop.f32.mrb[0].mxu0
        %v2907 = vadd.f32 %v2823, %v2906
        %v2908 = vpop.f32.mrb[0].mxu0
        %v2909 = vpop.f32.mrb[0].mxu0
        %v2910 = vpop.f32.mrb[0].mxu0
        %2911 = vdwg.mxu0
        %v2912 = vmax.f32 %v2907, 0.0
        %2913 = vst [vmem:[%s270] sm:$0x1] %v2912
        %s2914 = sand.u32 %s181, 1
        %s2915 = scalar_lea.sflag [#allocation3], %s2914
        %s2916 = sand.u32 %s181, 1
        %s2917 = scalar_lea.vmem [#allocation2], %s2916
        // Predicated region
        $region49: #{_forward_impl.1} parent=47 // pred_check
          %p2918 = pneg %p191
        $region50: #{_forward_impl.1} parent=47 // pred_check_branch
          %2920 = sbr.rel (%p2918) target = $region52
        $region51: #{_forward_impl.1} parent=47 // pred_region
          %s2922 = ssub.s32 16, 16
          %2923 = vsyncadd %s2915, %s2922
          %s2924 = smul.addr %s21, 16
          %s2925 = scalar_lea.hbm %s7, %s2924
          %s2927 = sshll.u32 %s2917, 4
          %s2928 = int_to_ptr.vmem [resolvable:$true] %s2927
          %2930 = dma.vmem_to_hbm [thread:$0]  %s2928, 16, %s2925, %s2915
        $region52: #{_forward_impl.1} parent=47 // pred_fallthru
          _
      $region48: #{_forward_impl.1} parent=5 // pred_fallthru
        _
      %p2931 = scmp.le.s32.totalorder 2, %s16
      // Predicated region
      $region53: #{_forward_impl.1} parent=5 // pred_check
        %p2932 = pneg %p2931
      $region54: #{_forward_impl.1} parent=5 // pred_check_branch
        %2934 = sbr.rel (%p2932) target = $region56
      $region55: #{_forward_impl.1} parent=5 // pred_region
        %s2935 = ssub.s32 %s16, 2
        // Predicated region
        $region57: #{_forward_impl.1} parent=55 // pred_check
          %p2936 = pneg %p197
        $region58: #{_forward_impl.1} parent=55 // pred_check_branch
          %2938 = sbr.rel (%p2936) target = $region60
        $region59: #{_forward_impl.1} parent=55 // pred_region
          %s2939 = sand.u32 %s182, 1
          %s2940 = scalar_lea.sflag [#allocation3], %s2939
          %s2941 = sand.u32 %s182, 1
          %s2942 = scalar_lea.vmem [#allocation2], %s2941
          %2943 = dma.done %s2940, 16
        $region60: #{_forward_impl.1} parent=55 // pred_fallthru
          _
      $region56: #{_forward_impl.1} parent=5 // pred_fallthru
        _
    $region6: #{_forward_impl.1} parent=1 // loop_footer
      %s20 = sadd.s32 1, %s16
    $region7: #{_forward_impl.1} parent=1 // loop_footer_branch
      %15 = sbr.rel target = $region3
    $region8: #{_forward_impl.1} parent=1 // loop_exit
      _
    %2944 = vsyncpa [#allocation3], 1
    %s2945 = scalar_lea.sflag [#allocation3], 1
    %2946 = vsyncpa %s2945, 1

</llo_original>
